<compile_context>
chip_gen: v5e
topology: v5e:2x2
jax: 0.10.0
libtpu: 0.0.40
codegen_flags: <defaults>
</compile_context>

<pallas_src>
import functools

import jax
import jax.numpy as jnp
import numpy as np
from jax.experimental import pallas as pl
from jax.experimental.pallas import tpu as pltpu


# ----------------------------------------------------------------------------
# Pallas kernel: one chunk of tc time steps of the 2-layer LSTM recurrence.
# Grid axis 0 walks time chunks sequentially; state is carried in VMEM scratch.
# ----------------------------------------------------------------------------
def _hier_lstm_kernel(x_ref,        # (1, tc*B, F)  current time chunk (streamed)
                      wih0_ref,     # (F, 4H)   resident VMEM
                      whh0_ref,     # (H, 4H)   resident VMEM
                      b0_ref,       # (1, 4H)   bias_ih_l0 + bias_hh_l0
                      wih1_ref,     # (H, 4H)   resident VMEM
                      whh1_ref,     # (H, 4H)   resident VMEM
                      b1_ref,       # (1, 4H)   bias_ih_l1 + bias_hh_l1
                      pool_ref,     # (S, B)    averaging matrix (1/N, 0 for pad rows)
                      out_ref,      # (S, H)
                      gates_ref,    # (tc*B, 4H) f32 scratch (layer-1 input proj)
                      h1_ref, c1_ref, h2_ref, c2_ref,   # (B, H) f32 scratch
                      *, tc, b_pad, hidden, t_real, guard_pad):
    H = hidden
    B = b_pad

    @pl.when(pl.program_id(0) == 0)
    def _init():
        z = jnp.zeros((B, H), jnp.float32)
        h1_ref[...] = z
        c1_ref[...] = z
        h2_ref[...] = z
        c2_ref[...] = z

    # ---- Hoisted layer-1 input projection for the whole chunk --------------
    # One big MXU matmul per chunk; result parked in VMEM scratch so it does
    # not occupy vregs across the unrolled recurrence (per-step vld is cheap).
    gates_ref[...] = jnp.dot(x_ref[0], wih0_ref[...],
                             preferred_element_type=jnp.float32) + b0_ref[...]

    whh0 = whh0_ref[...]                                   # (H, 4H)
    wih1 = wih1_ref[...]                                   # (H, 4H)
    whh1 = whh1_ref[...]                                   # (H, 4H)
    b1b = jnp.broadcast_to(b1_ref[...], (B, 4 * H))        # hoisted broadcast

    def cell(gates, c_prev):
        # PyTorch gate order: i, f, g, o
        i = jax.nn.sigmoid(gates[:, 0 * H:1 * H])
        f = jax.nn.sigmoid(gates[:, 1 * H:2 * H])
        g = jnp.tanh(gates[:, 2 * H:3 * H])
        o = jax.nn.sigmoid(gates[:, 3 * H:4 * H])
        c = f * c_prev + i * g
        h = o * jnp.tanh(c)
        return h, c

    h1 = h1_ref[...]
    c1 = c1_ref[...]
    h2 = h2_ref[...]
    c2 = c2_ref[...]
    chunk_base = pl.program_id(0) * tc

    # ---- Recurrence over the chunk: fully unrolled static loop -------------
    for s in range(tc):
        # Layer 1: input projection already done; only the recurrent dot here.
        g1 = gates_ref[pl.ds(s * B, B), :] + jnp.dot(
            h1, whh0, preferred_element_type=jnp.float32)
        h1n, c1n = cell(g1, c1)
        # Layer 2: two back-to-back MXU dots (no per-step lane concat).
        g2 = (jnp.dot(h1n, wih1, preferred_element_type=jnp.float32)
              + jnp.dot(h2, whh1, preferred_element_type=jnp.float32)
              + b1b)
        h2n, c2n = cell(g2, c2)
        if guard_pad:
            # Padded (beyond t_real) time steps must not advance LSTM state.
            valid = (chunk_base + s) < t_real
            h1 = jnp.where(valid, h1n, h1)
            c1 = jnp.where(valid, c1n, c1)
            h2 = jnp.where(valid, h2n, h2)
            c2 = jnp.where(valid, c2n, c2)
        else:
            h1, c1, h2, c2 = h1n, c1n, h2n, c2n

    h1_ref[...] = h1
    c1_ref[...] = c1
    h2_ref[...] = h2
    c2_ref[...] = c2

    # ---- Final step: mean over the time-series axis via masked matmul ------
    @pl.when(pl.program_id(0) == pl.num_programs(0) - 1)
    def _finalize():
        out_ref[...] = jnp.dot(pool_ref[...], h2,
                               preferred_element_type=jnp.float32)


def _choose_chunk_steps(T, b_pad, f, hidden, budget_bytes):
    """Time-chunk length sized by the real per-chunk working set.

    Per time step the chunk costs: 2x-buffered x rows (b_pad*f) plus the
    gates scratch rows (b_pad*4H), all f32.  Prefer divisors of T; fall back
    to a non-divisor (with kernel-side guarding of padded steps) when the
    best divisor would waste more than half the budgeted chunk length.
    """
    per_step = b_pad * (2 * f + 4 * hidden) * 4
    cap = int(max(1, min(64, budget_bytes // max(per_step, 1))))
    if T <= cap:
        return T
    best_div = max(d for d in range(1, cap + 1) if T % d == 0)
    if 2 * best_div >= cap:
        return best_div
    return cap


# ----------------------------------------------------------------------------
# Wrapper: parameter plumbing + pallas_call.
# ----------------------------------------------------------------------------
def hierarchical_lstm_forward(x, params):
    """x: (S, N, T, F) float32 -> (S, H) float32."""
    S, N, T, F = x.shape
    H = params["whh0"].shape[1]  # whh0 is (4H, H)
    H4 = 4 * H
    B = S * N
    B_pad = -(-B // 8) * 8       # sublane-align batch rows
    f32 = 4

    # Generation-aware VMEM capacity (64 MiB on v7x, 128 MiB on v5e/v6e).
    try:
        vmem_cap = int(pltpu.get_tpu_info().vmem_capacity_bytes)
    except Exception:
        vmem_cap = 64 << 20      # conservative fallback (v7x per-TC)

    # Resident, single-buffered weights + persistent state + output.
    weight_b = (F * H4 + 3 * H * H4 + 2 * H4 + S * B_pad) * f32
    state_b = 4 * B_pad * H * f32
    fixed_b = weight_b + state_b + 2 * S * H * f32
    stream_budget = max(4 << 20, vmem_cap // 3 - fixed_b)

    tc = _choose_chunk_steps(T, B_pad, F, H, stream_budget)
    num_chunks = -(-T // tc)
    T_pad = num_chunks * tc

    # Sequence as (T_pad, B_pad, F): each step is a contiguous (B, F) slab.
    xb = x.reshape(B, T, F).astype(jnp.float32)
    if B_pad != B or T_pad != T:
        xb = jnp.pad(xb, ((0, B_pad - B), (0, T_pad - T), (0, 0)))
    x_tbf = jnp.transpose(xb, (1, 0, 2))                     # (T_pad, B_pad, F)
    x_chunks = x_tbf.reshape(num_chunks, tc * B_pad, F)      # lane-dense slabs

    # Weights pre-transposed to (in, 4H); biases pre-summed.
    wih0_t = params["wih0"].T.astype(jnp.float32)            # (F, 4H)
    whh0_t = params["whh0"].T.astype(jnp.float32)            # (H, 4H)
    wih1_t = params["wih1"].T.astype(jnp.float32)            # (H, 4H)
    whh1_t = params["whh1"].T.astype(jnp.float32)            # (H, 4H)
    b0 = (params["bih0"] + params["bhh0"])[None, :].astype(jnp.float32)
    b1 = (params["bih1"] + params["bhh1"])[None, :].astype(jnp.float32)

    # Averaging matrix: out[s] = mean_n h2[s*N + n]; padded rows get weight 0.
    pool_np = np.zeros((S, B_pad), np.float32)
    for s in range(S):
        pool_np[s, s * N:(s + 1) * N] = 1.0 / float(N)
    pool = jnp.asarray(pool_np)

    # VMEM budget estimate (streamed x is double-buffered; weights are not).
    x_chunk_b = tc * B_pad * F * f32
    gates_b = tc * B_pad * H4 * f32
    work_b = (8 * B_pad * H + tc * B_pad * H4) * f32
    est = 2 * x_chunk_b + gates_b + fixed_b + work_b
    vmem_limit = int(min(max(est + (8 << 20), 16 << 20),
                         int(vmem_cap * 0.75)))

    kernel = functools.partial(_hier_lstm_kernel, tc=tc, b_pad=B_pad, hidden=H,
                               t_real=T, guard_pad=(T_pad != T))

    # Loop-invariant operands: untiled, resident in VMEM (single-buffered).
    resident = pl.BlockSpec(memory_space=pltpu.MemorySpace.VMEM)

    grid_spec = pltpu.PrefetchScalarGridSpec(
        num_scalar_prefetch=0,
        grid=(num_chunks,),
        in_specs=[
            pl.BlockSpec((1, tc * B_pad, F), lambda c: (c, 0, 0)),  # streamed x
            resident,   # wih0_t
            resident,   # whh0_t
            resident,   # b0
            resident,   # wih1_t
            resident,   # whh1_t
            resident,   # b1
            resident,   # pool
        ],
        out_specs=pl.BlockSpec((S, H), lambda c: (0, 0)),
        scratch_shapes=[pltpu.VMEM((tc * B_pad, H4), jnp.float32)]   # gates
                       + [pltpu.VMEM((B_pad, H), jnp.float32)] * 4,  # h1,c1,h2,c2
    )

    out = pl.pallas_call(
        kernel,
        out_shape=jax.ShapeDtypeStruct((S, H), jnp.float32),
        grid_spec=grid_spec,
        compiler_params=pltpu.CompilerParams(
            dimension_semantics=("arbitrary",),
            vmem_limit_bytes=vmem_limit),
    )(x_chunks, wih0_t, whh0_t, b0, wih1_t, whh1_t, b1, pool)
    return out


# ----------------------------------------------------------------------------
# Deterministic parameter init (PyTorch nn.LSTM shapes, U(-k, k), k=1/sqrt(H)).
# ----------------------------------------------------------------------------
def init_params(key, num_features, hidden_size):
    H, F = hidden_size, num_features
    k = 1.0 / np.sqrt(H)
    keys = jax.random.split(key, 8)
    u = lambda kk, shape: jax.random.uniform(kk, shape, jnp.float32, -k, k)
    return {
        "wih0": u(keys[0], (4 * H, F)),
        "whh0": u(keys[1], (4 * H, H)),
        "bih0": u(keys[2], (4 * H,)),
        "bhh0": u(keys[3], (4 * H,)),
        "wih1": u(keys[4], (4 * H, H)),
        "whh1": u(keys[5], (4 * H, H)),
        "bih1": u(keys[6], (4 * H,)),
        "bhh1": u(keys[7], (4 * H,)),
    }


# ----------------------------------------------------------------------------
# Pure-JAX reference (mirrors the PyTorch forward) for correctness checking.
# ----------------------------------------------------------------------------
def reference_forward(x, p):
    S, N, T, F = x.shape
    H = p["whh0"].shape[1]
    B = S * N
    xs = x.reshape(B, T, F)

    def lstm_layer(inputs, wih, whh, bih, bhh):
        def step(carry, x_t):
            h, c = carry
            g = x_t @ wih.T + h @ whh.T + bih + bhh
            i, f, gg, o = jnp.split(g, 4, axis=-1)
            i, f, o = jax.nn.sigmoid(i), jax.nn.sigmoid(f), jax.nn.sigmoid(o)
            gg = jnp.tanh(gg)
            c = f * c + i * gg
            h = o * jnp.tanh(c)
            return (h, c), h

        init = (jnp.zeros((B, H), jnp.float32), jnp.zeros((B, H), jnp.float32))
        _, hs = jax.lax.scan(step, init, jnp.swapaxes(inputs, 0, 1))
        return jnp.swapaxes(hs, 0, 1)  # (B, T, H)

    out1 = lstm_layer(xs, p["wih0"], p["whh0"], p["bih0"], p["bhh0"])
    out2 = lstm_layer(out1, p["wih1"], p["whh1"], p["bih1"], p["bhh1"])
    last = out2[:, -1, :].reshape(S, N, H)
    # permute(0,2,1) + AdaptiveAvgPool1d(1) + squeeze == mean over N
    return last.mean(axis=1)


if __name__ == "__main__":
    # Small shapes consistent with the module's forward.
    num_samples = 2        # S
    num_time_series = 4    # N
    num_time_steps = 8     # T
    num_features = 16      # F
    hidden_size = 32       # H

    key = jax.random.PRNGKey(0)
    k_x, k_p = jax.random.split(key)
    x = jax.random.normal(
        k_x, (num_samples, num_time_series, num_time_steps, num_features),
        dtype=jnp.float32)
    params = init_params(k_p, num_features, hidden_size)

    out = hierarchical_lstm_forward(x, params)
    out = jax.block_until_ready(out)

    ref = jax.block_until_ready(reference_forward(x, params))
    np.testing.assert_allclose(np.asarray(out), np.asarray(ref),
                               rtol=2e-5, atol=2e-5)
    assert out.shape == (num_samples, hidden_size)
    print("KERNEL_OK")
</pallas_src>

<mosaic_0001>
module attributes {stable_mosaic.version = 11 : i64} {
  func.func @_hier_lstm_kernel(%arg0: i32, %arg1: memref<1x64x16xf32, #tpu.memory_space<vmem>>, %arg2: memref<16x128xf32, #tpu.memory_space<vmem>>, %arg3: memref<32x128xf32, #tpu.memory_space<vmem>>, %arg4: memref<1x128xf32, #tpu.memory_space<vmem>>, %arg5: memref<32x128xf32, #tpu.memory_space<vmem>>, %arg6: memref<32x128xf32, #tpu.memory_space<vmem>>, %arg7: memref<1x128xf32, #tpu.memory_space<vmem>>, %arg8: memref<2x8xf32, #tpu.memory_space<vmem>>, %arg9: memref<2x32xf32, #tpu.memory_space<vmem>>, %arg10: memref<64x128xf32, #tpu.memory_space<vmem>>, %arg11: memref<8x32xf32, #tpu.memory_space<vmem>>, %arg12: memref<8x32xf32, #tpu.memory_space<vmem>>, %arg13: memref<8x32xf32, #tpu.memory_space<vmem>>, %arg14: memref<8x32xf32, #tpu.memory_space<vmem>>) attributes {dimension_semantics = [#tpu.dimension_semantics<arbitrary>], iteration_bounds = array<i64: 1>, scalar_prefetch = 0 : i64, scratch_operands = 5 : i64, tpu.core_type = #tpu.core_type<tc>, window_params = [{transform_indices = @transform_0, window_bounds = array<i64: 1, 64, 16>}, {pipeline_mode = #tpu.pipeline_mode<synchronous>, transform_indices = @transform_1, window_bounds = array<i64: 16, 128>}, {pipeline_mode = #tpu.pipeline_mode<synchronous>, transform_indices = @transform_2, window_bounds = array<i64: 32, 128>}, {pipeline_mode = #tpu.pipeline_mode<synchronous>, transform_indices = @transform_3, window_bounds = array<i64: 1, 128>}, {pipeline_mode = #tpu.pipeline_mode<synchronous>, transform_indices = @transform_4, window_bounds = array<i64: 32, 128>}, {pipeline_mode = #tpu.pipeline_mode<synchronous>, transform_indices = @transform_5, window_bounds = array<i64: 32, 128>}, {pipeline_mode = #tpu.pipeline_mode<synchronous>, transform_indices = @transform_6, window_bounds = array<i64: 1, 128>}, {pipeline_mode = #tpu.pipeline_mode<synchronous>, transform_indices = @transform_7, window_bounds = array<i64: 2, 8>}, {pipeline_mode = #tpu.pipeline_mode<synchronous>, transform_indices = @transform_8, window_bounds = array<i64: 2, 32>}]} {
    %c0_i32 = arith.constant 0 : i32
    %0 = arith.cmpi eq, %arg0, %c0_i32 : i32
    %1 = arith.extui %0 : i1 to i32
    %c0_i32_0 = arith.constant 0 : i32
    %2 = arith.cmpi ne, %1, %c0_i32_0 : i32
    scf.if %2 {
      %cst_116 = arith.constant 0.000000e+00 : f32
      %484 = vector.broadcast %cst_116 : f32 to vector<8x32xf32>
      %c0_117 = arith.constant 0 : index
      %c0_118 = arith.constant 0 : index
      %485 = vector.load %arg11[%c0_117, %c0_118] : memref<8x32xf32, #tpu.memory_space<vmem>>, vector<8x32xf32>
      tpu.vector_store %arg11[%c0_117, %c0_118], %484 {strides = array<i32>} : memref<8x32xf32, #tpu.memory_space<vmem>>, vector<8x32xf32>,
      %c0_119 = arith.constant 0 : index
      %c0_120 = arith.constant 0 : index
      %486 = vector.load %arg12[%c0_119, %c0_120] : memref<8x32xf32, #tpu.memory_space<vmem>>, vector<8x32xf32>
      tpu.vector_store %arg12[%c0_119, %c0_120], %484 {strides = array<i32>} : memref<8x32xf32, #tpu.memory_space<vmem>>, vector<8x32xf32>,
      %c0_121 = arith.constant 0 : index
      %c0_122 = arith.constant 0 : index
      %487 = vector.load %arg13[%c0_121, %c0_122] : memref<8x32xf32, #tpu.memory_space<vmem>>, vector<8x32xf32>
      tpu.vector_store %arg13[%c0_121, %c0_122], %484 {strides = array<i32>} : memref<8x32xf32, #tpu.memory_space<vmem>>, vector<8x32xf32>,
      %c0_123 = arith.constant 0 : index
      %c0_124 = arith.constant 0 : index
      %488 = vector.load %arg14[%c0_123, %c0_124] : memref<8x32xf32, #tpu.memory_space<vmem>>, vector<8x32xf32>
      tpu.vector_store %arg14[%c0_123, %c0_124], %484 {strides = array<i32>} : memref<8x32xf32, #tpu.memory_space<vmem>>, vector<8x32xf32>,
    } else {
    }
    %c0 = arith.constant 0 : index
    %c0_1 = arith.constant 0 : index
    %c0_2 = arith.constant 0 : index
    %3 = vector.load %arg1[%c0, %c0_1, %c0_2] : memref<1x64x16xf32, #tpu.memory_space<vmem>>, vector<1x64x16xf32>
    %4 = vector.shape_cast %3 : vector<1x64x16xf32> to vector<64x16xf32>
    %c0_3 = arith.constant 0 : index
    %c0_4 = arith.constant 0 : index
    %5 = vector.load %arg2[%c0_3, %c0_4] : memref<16x128xf32, #tpu.memory_space<vmem>>, vector<16x128xf32>
    %cst = arith.constant dense<0.000000e+00> : vector<64x128xf32>
    %6 = tpu.matmul %4, %5, %cst {dimension_numbers = #tpu.dot_dimension_numbers<[1], [0], [0], [1], [0, 0, 1, 1], [], []>} : vector<64x16xf32>, vector<16x128xf32>, vector<64x128xf32> -> vector<64x128xf32>
    %c0_5 = arith.constant 0 : index
    %c0_6 = arith.constant 0 : index
    %7 = vector.load %arg4[%c0_5, %c0_6] : memref<1x128xf32, #tpu.memory_space<vmem>>, vector<1x128xf32>
    %8 = vector.broadcast %7 : vector<1x128xf32> to vector<64x128xf32>
    %9 = arith.addf %6, %8 : vector<64x128xf32>
    %c0_7 = arith.constant 0 : index
    %c0_8 = arith.constant 0 : index
    %10 = vector.load %arg10[%c0_7, %c0_8] : memref<64x128xf32, #tpu.memory_space<vmem>>, vector<64x128xf32>
    tpu.vector_store %arg10[%c0_7, %c0_8], %9 {strides = array<i32>} : memref<64x128xf32, #tpu.memory_space<vmem>>, vector<64x128xf32>,
    %c0_9 = arith.constant 0 : index
    %c0_10 = arith.constant 0 : index
    %11 = vector.load %arg3[%c0_9, %c0_10] : memref<32x128xf32, #tpu.memory_space<vmem>>, vector<32x128xf32>
    %c0_11 = arith.constant 0 : index
    %c0_12 = arith.constant 0 : index
    %12 = vector.load %arg5[%c0_11, %c0_12] : memref<32x128xf32, #tpu.memory_space<vmem>>, vector<32x128xf32>
    %c0_13 = arith.constant 0 : index
    %c0_14 = arith.constant 0 : index
    %13 = vector.load %arg6[%c0_13, %c0_14] : memref<32x128xf32, #tpu.memory_space<vmem>>, vector<32x128xf32>
    %c0_15 = arith.constant 0 : index
    %c0_16 = arith.constant 0 : index
    %14 = vector.load %arg7[%c0_15, %c0_16] : memref<1x128xf32, #tpu.memory_space<vmem>>, vector<1x128xf32>
    %15 = vector.shape_cast %14 : vector<1x128xf32> to vector<1x128xf32>
    %16 = vector.broadcast %15 : vector<1x128xf32> to vector<8x128xf32>
    %c0_17 = arith.constant 0 : index
    %c0_18 = arith.constant 0 : index
    %17 = vector.load %arg11[%c0_17, %c0_18] : memref<8x32xf32, #tpu.memory_space<vmem>>, vector<8x32xf32>
    %c0_19 = arith.constant 0 : index
    %c0_20 = arith.constant 0 : index
    %18 = vector.load %arg12[%c0_19, %c0_20] : memref<8x32xf32, #tpu.memory_space<vmem>>, vector<8x32xf32>
    %c0_21 = arith.constant 0 : index
    %c0_22 = arith.constant 0 : index
    %19 = vector.load %arg13[%c0_21, %c0_22] : memref<8x32xf32, #tpu.memory_space<vmem>>, vector<8x32xf32>
    %c0_23 = arith.constant 0 : index
    %c0_24 = arith.constant 0 : index
    %20 = vector.load %arg14[%c0_23, %c0_24] : memref<8x32xf32, #tpu.memory_space<vmem>>, vector<8x32xf32>
    %c0_25 = arith.constant 0 : index
    %c0_26 = arith.constant 0 : index
    %21 = vector.load %arg10[%c0_25, %c0_26] : memref<64x128xf32, #tpu.memory_space<vmem>>, vector<8x128xf32>
    %cst_27 = arith.constant dense<0.000000e+00> : vector<8x128xf32>
    %22 = tpu.matmul %17, %11, %cst_27 {dimension_numbers = #tpu.dot_dimension_numbers<[1], [0], [0], [1], [0, 0, 1, 1], [], []>} : vector<8x32xf32>, vector<32x128xf32>, vector<8x128xf32> -> vector<8x128xf32>
    %23 = arith.addf %21, %22 : vector<8x128xf32>
    %24 = vector.extract_strided_slice %23 {offsets = [0, 0], sizes = [8, 32], strides = [1, 1]} : vector<8x128xf32> to vector<8x32xf32>
    %25 = arith.negf %24 : vector<8x32xf32>
    %26 = math.exp %25 : vector<8x32xf32>
    %cst_28 = arith.constant 1.000000e+00 : f32
    %27 = vector.broadcast %cst_28 : f32 to vector<8x32xf32>
    %28 = arith.addf %27, %26 : vector<8x32xf32>
    %29 = arith.divf %27, %28 : vector<8x32xf32>
    %30 = vector.extract_strided_slice %23 {offsets = [0, 32], sizes = [8, 32], strides = [1, 1]} : vector<8x128xf32> to vector<8x32xf32>
    %31 = arith.negf %30 : vector<8x32xf32>
    %32 = math.exp %31 : vector<8x32xf32>
    %cst_29 = arith.constant 1.000000e+00 : f32
    %33 = vector.broadcast %cst_29 : f32 to vector<8x32xf32>
    %34 = arith.addf %33, %32 : vector<8x32xf32>
    %35 = arith.divf %33, %34 : vector<8x32xf32>
    %36 = vector.extract_strided_slice %23 {offsets = [0, 64], sizes = [8, 32], strides = [1, 1]} : vector<8x128xf32> to vector<8x32xf32>
    %37 = math.tanh %36 : vector<8x32xf32>
    %38 = vector.extract_strided_slice %23 {offsets = [0, 96], sizes = [8, 32], strides = [1, 1]} : vector<8x128xf32> to vector<8x32xf32>
    %39 = arith.negf %38 : vector<8x32xf32>
    %40 = math.exp %39 : vector<8x32xf32>
    %cst_30 = arith.constant 1.000000e+00 : f32
    %41 = vector.broadcast %cst_30 : f32 to vector<8x32xf32>
    %42 = arith.addf %41, %40 : vector<8x32xf32>
    %43 = arith.divf %41, %42 : vector<8x32xf32>
    %44 = arith.mulf %35, %18 : vector<8x32xf32>
    %45 = arith.mulf %29, %37 : vector<8x32xf32>
    %46 = arith.addf %44, %45 : vector<8x32xf32>
    %47 = math.tanh %46 : vector<8x32xf32>
    %48 = arith.mulf %43, %47 : vector<8x32xf32>
    %cst_31 = arith.constant dense<0.000000e+00> : vector<8x128xf32>
    %49 = tpu.matmul %48, %12, %cst_31 {dimension_numbers = #tpu.dot_dimension_numbers<[1], [0], [0], [1], [0, 0, 1, 1], [], []>} : vector<8x32xf32>, vector<32x128xf32>, vector<8x128xf32> -> vector<8x128xf32>
    %cst_32 = arith.constant dense<0.000000e+00> : vector<8x128xf32>
    %50 = tpu.matmul %19, %13, %cst_32 {dimension_numbers = #tpu.dot_dimension_numbers<[1], [0], [0], [1], [0, 0, 1, 1], [], []>} : vector<8x32xf32>, vector<32x128xf32>, vector<8x128xf32> -> vector<8x128xf32>
    %51 = arith.addf %49, %50 : vector<8x128xf32>
    %52 = arith.addf %51, %16 : vector<8x128xf32>
    %53 = vector.extract_strided_slice %52 {offsets = [0, 0], sizes = [8, 32], strides = [1, 1]} : vector<8x128xf32> to vector<8x32xf32>
    %54 = arith.negf %53 : vector<8x32xf32>
    %55 = math.exp %54 : vector<8x32xf32>
    %cst_33 = arith.constant 1.000000e+00 : f32
    %56 = vector.broadcast %cst_33 : f32 to vector<8x32xf32>
    %57 = arith.addf %56, %55 : vector<8x32xf32>
    %58 = arith.divf %56, %57 : vector<8x32xf32>
    %59 = vector.extract_strided_slice %52 {offsets = [0, 32], sizes = [8, 32], strides = [1, 1]} : vector<8x128xf32> to vector<8x32xf32>
    %60 = arith.negf %59 : vector<8x32xf32>
    %61 = math.exp %60 : vector<8x32xf32>
    %cst_34 = arith.constant 1.000000e+00 : f32
    %62 = vector.broadcast %cst_34 : f32 to vector<8x32xf32>
    %63 = arith.addf %62, %61 : vector<8x32xf32>
    %64 = arith.divf %62, %63 : vector<8x32xf32>
    %65 = vector.extract_strided_slice %52 {offsets = [0, 64], sizes = [8, 32], strides = [1, 1]} : vector<8x128xf32> to vector<8x32xf32>
    %66 = math.tanh %65 : vector<8x32xf32>
    %67 = vector.extract_strided_slice %52 {offsets = [0, 96], sizes = [8, 32], strides = [1, 1]} : vector<8x128xf32> to vector<8x32xf32>
    %68 = arith.negf %67 : vector<8x32xf32>
    %69 = math.exp %68 : vector<8x32xf32>
    %cst_35 = arith.constant 1.000000e+00 : f32
    %70 = vector.broadcast %cst_35 : f32 to vector<8x32xf32>
    %71 = arith.addf %70, %69 : vector<8x32xf32>
    %72 = arith.divf %70, %71 : vector<8x32xf32>
    %73 = arith.mulf %64, %20 : vector<8x32xf32>
    %74 = arith.mulf %58, %66 : vector<8x32xf32>
    %75 = arith.addf %73, %74 : vector<8x32xf32>
    %76 = math.tanh %75 : vector<8x32xf32>
    %77 = arith.mulf %72, %76 : vector<8x32xf32>
    %c8 = arith.constant 8 : index
    %c0_36 = arith.constant 0 : index
    %78 = vector.load %arg10[%c8, %c0_36] : memref<64x128xf32, #tpu.memory_space<vmem>>, vector<8x128xf32>
    %cst_37 = arith.constant dense<0.000000e+00> : vector<8x128xf32>
    %79 = tpu.matmul %48, %11, %cst_37 {dimension_numbers = #tpu.dot_dimension_numbers<[1], [0], [0], [1], [0, 0, 1, 1], [], []>} : vector<8x32xf32>, vector<32x128xf32>, vector<8x128xf32> -> vector<8x128xf32>
    %80 = arith.addf %78, %79 : vector<8x128xf32>
    %81 = vector.extract_strided_slice %80 {offsets = [0, 0], sizes = [8, 32], strides = [1, 1]} : vector<8x128xf32> to vector<8x32xf32>
    %82 = arith.negf %81 : vector<8x32xf32>
    %83 = math.exp %82 : vector<8x32xf32>
    %cst_38 = arith.constant 1.000000e+00 : f32
    %84 = vector.broadcast %cst_38 : f32 to vector<8x32xf32>
    %85 = arith.addf %84, %83 : vector<8x32xf32>
    %86 = arith.divf %84, %85 : vector<8x32xf32>
    %87 = vector.extract_strided_slice %80 {offsets = [0, 32], sizes = [8, 32], strides = [1, 1]} : vector<8x128xf32> to vector<8x32xf32>
    %88 = arith.negf %87 : vector<8x32xf32>
    %89 = math.exp %88 : vector<8x32xf32>
    %cst_39 = arith.constant 1.000000e+00 : f32
    %90 = vector.broadcast %cst_39 : f32 to vector<8x32xf32>
    %91 = arith.addf %90, %89 : vector<8x32xf32>
    %92 = arith.divf %90, %91 : vector<8x32xf32>
    %93 = vector.extract_strided_slice %80 {offsets = [0, 64], sizes = [8, 32], strides = [1, 1]} : vector<8x128xf32> to vector<8x32xf32>
    %94 = math.tanh %93 : vector<8x32xf32>
    %95 = vector.extract_strided_slice %80 {offsets = [0, 96], sizes = [8, 32], strides = [1, 1]} : vector<8x128xf32> to vector<8x32xf32>
    %96 = arith.negf %95 : vector<8x32xf32>
    %97 = math.exp %96 : vector<8x32xf32>
    %cst_40 = arith.constant 1.000000e+00 : f32
    %98 = vector.broadcast %cst_40 : f32 to vector<8x32xf32>
    %99 = arith.addf %98, %97 : vector<8x32xf32>
    %100 = arith.divf %98, %99 : vector<8x32xf32>
    %101 = arith.mulf %92, %46 : vector<8x32xf32>
    %102 = arith.mulf %86, %94 : vector<8x32xf32>
    %103 = arith.addf %101, %102 : vector<8x32xf32>
    %104 = math.tanh %103 : vector<8x32xf32>
    %105 = arith.mulf %100, %104 : vector<8x32xf32>
    %cst_41 = arith.constant dense<0.000000e+00> : vector<8x128xf32>
    %106 = tpu.matmul %105, %12, %cst_41 {dimension_numbers = #tpu.dot_dimension_numbers<[1], [0], [0], [1], [0, 0, 1, 1], [], []>} : vector<8x32xf32>, vector<32x128xf32>, vector<8x128xf32> -> vector<8x128xf32>
    %cst_42 = arith.constant dense<0.000000e+00> : vector<8x128xf32>
    %107 = tpu.matmul %77, %13, %cst_42 {dimension_numbers = #tpu.dot_dimension_numbers<[1], [0], [0], [1], [0, 0, 1, 1], [], []>} : vector<8x32xf32>, vector<32x128xf32>, vector<8x128xf32> -> vector<8x128xf32>
    %108 = arith.addf %106, %107 : vector<8x128xf32>
    %109 = arith.addf %108, %16 : vector<8x128xf32>
    %110 = vector.extract_strided_slice %109 {offsets = [0, 0], sizes = [8, 32], strides = [1, 1]} : vector<8x128xf32> to vector<8x32xf32>
    %111 = arith.negf %110 : vector<8x32xf32>
    %112 = math.exp %111 : vector<8x32xf32>
    %cst_43 = arith.constant 1.000000e+00 : f32
    %113 = vector.broadcast %cst_43 : f32 to vector<8x32xf32>
    %114 = arith.addf %113, %112 : vector<8x32xf32>
    %115 = arith.divf %113, %114 : vector<8x32xf32>
    %116 = vector.extract_strided_slice %109 {offsets = [0, 32], sizes = [8, 32], strides = [1, 1]} : vector<8x128xf32> to vector<8x32xf32>
    %117 = arith.negf %116 : vector<8x32xf32>
    %118 = math.exp %117 : vector<8x32xf32>
    %cst_44 = arith.constant 1.000000e+00 : f32
    %119 = vector.broadcast %cst_44 : f32 to vector<8x32xf32>
    %120 = arith.addf %119, %118 : vector<8x32xf32>
    %121 = arith.divf %119, %120 : vector<8x32xf32>
    %122 = vector.extract_strided_slice %109 {offsets = [0, 64], sizes = [8, 32], strides = [1, 1]} : vector<8x128xf32> to vector<8x32xf32>
    %123 = math.tanh %122 : vector<8x32xf32>
    %124 = vector.extract_strided_slice %109 {offsets = [0, 96], sizes = [8, 32], strides = [1, 1]} : vector<8x128xf32> to vector<8x32xf32>
    %125 = arith.negf %124 : vector<8x32xf32>
    %126 = math.exp %125 : vector<8x32xf32>
    %cst_45 = arith.constant 1.000000e+00 : f32
    %127 = vector.broadcast %cst_45 : f32 to vector<8x32xf32>
    %128 = arith.addf %127, %126 : vector<8x32xf32>
    %129 = arith.divf %127, %128 : vector<8x32xf32>
    %130 = arith.mulf %121, %75 : vector<8x32xf32>
    %131 = arith.mulf %115, %123 : vector<8x32xf32>
    %132 = arith.addf %130, %131 : vector<8x32xf32>
    %133 = math.tanh %132 : vector<8x32xf32>
    %134 = arith.mulf %129, %133 : vector<8x32xf32>
    %c16 = arith.constant 16 : index
    %c0_46 = arith.constant 0 : index
    %135 = vector.load %arg10[%c16, %c0_46] : memref<64x128xf32, #tpu.memory_space<vmem>>, vector<8x128xf32>
    %cst_47 = arith.constant dense<0.000000e+00> : vector<8x128xf32>
    %136 = tpu.matmul %105, %11, %cst_47 {dimension_numbers = #tpu.dot_dimension_numbers<[1], [0], [0], [1], [0, 0, 1, 1], [], []>} : vector<8x32xf32>, vector<32x128xf32>, vector<8x128xf32> -> vector<8x128xf32>
    %137 = arith.addf %135, %136 : vector<8x128xf32>
    %138 = vector.extract_strided_slice %137 {offsets = [0, 0], sizes = [8, 32], strides = [1, 1]} : vector<8x128xf32> to vector<8x32xf32>
    %139 = arith.negf %138 : vector<8x32xf32>
    %140 = math.exp %139 : vector<8x32xf32>
    %cst_48 = arith.constant 1.000000e+00 : f32
    %141 = vector.broadcast %cst_48 : f32 to vector<8x32xf32>
    %142 = arith.addf %141, %140 : vector<8x32xf32>
    %143 = arith.divf %141, %142 : vector<8x32xf32>
    %144 = vector.extract_strided_slice %137 {offsets = [0, 32], sizes = [8, 32], strides = [1, 1]} : vector<8x128xf32> to vector<8x32xf32>
    %145 = arith.negf %144 : vector<8x32xf32>
    %146 = math.exp %145 : vector<8x32xf32>
    %cst_49 = arith.constant 1.000000e+00 : f32
    %147 = vector.broadcast %cst_49 : f32 to vector<8x32xf32>
    %148 = arith.addf %147, %146 : vector<8x32xf32>
    %149 = arith.divf %147, %148 : vector<8x32xf32>
    %150 = vector.extract_strided_slice %137 {offsets = [0, 64], sizes = [8, 32], strides = [1, 1]} : vector<8x128xf32> to vector<8x32xf32>
    %151 = math.tanh %150 : vector<8x32xf32>
    %152 = vector.extract_strided_slice %137 {offsets = [0, 96], sizes = [8, 32], strides = [1, 1]} : vector<8x128xf32> to vector<8x32xf32>
    %153 = arith.negf %152 : vector<8x32xf32>
    %154 = math.exp %153 : vector<8x32xf32>
    %cst_50 = arith.constant 1.000000e+00 : f32
    %155 = vector.broadcast %cst_50 : f32 to vector<8x32xf32>
    %156 = arith.addf %155, %154 : vector<8x32xf32>
    %157 = arith.divf %155, %156 : vector<8x32xf32>
    %158 = arith.mulf %149, %103 : vector<8x32xf32>
    %159 = arith.mulf %143, %151 : vector<8x32xf32>
    %160 = arith.addf %158, %159 : vector<8x32xf32>
    %161 = math.tanh %160 : vector<8x32xf32>
    %162 = arith.mulf %157, %161 : vector<8x32xf32>
    %cst_51 = arith.constant dense<0.000000e+00> : vector<8x128xf32>
    %163 = tpu.matmul %162, %12, %cst_51 {dimension_numbers = #tpu.dot_dimension_numbers<[1], [0], [0], [1], [0, 0, 1, 1], [], []>} : vector<8x32xf32>, vector<32x128xf32>, vector<8x128xf32> -> vector<8x128xf32>
    %cst_52 = arith.constant dense<0.000000e+00> : vector<8x128xf32>
    %164 = tpu.matmul %134, %13, %cst_52 {dimension_numbers = #tpu.dot_dimension_numbers<[1], [0], [0], [1], [0, 0, 1, 1], [], []>} : vector<8x32xf32>, vector<32x128xf32>, vector<8x128xf32> -> vector<8x128xf32>
    %165 = arith.addf %163, %164 : vector<8x128xf32>
    %166 = arith.addf %165, %16 : vector<8x128xf32>
    %167 = vector.extract_strided_slice %166 {offsets = [0, 0], sizes = [8, 32], strides = [1, 1]} : vector<8x128xf32> to vector<8x32xf32>
    %168 = arith.negf %167 : vector<8x32xf32>
    %169 = math.exp %168 : vector<8x32xf32>
    %cst_53 = arith.constant 1.000000e+00 : f32
    %170 = vector.broadcast %cst_53 : f32 to vector<8x32xf32>
    %171 = arith.addf %170, %169 : vector<8x32xf32>
    %172 = arith.divf %170, %171 : vector<8x32xf32>
    %173 = vector.extract_strided_slice %166 {offsets = [0, 32], sizes = [8, 32], strides = [1, 1]} : vector<8x128xf32> to vector<8x32xf32>
    %174 = arith.negf %173 : vector<8x32xf32>
    %175 = math.exp %174 : vector<8x32xf32>
    %cst_54 = arith.constant 1.000000e+00 : f32
    %176 = vector.broadcast %cst_54 : f32 to vector<8x32xf32>
    %177 = arith.addf %176, %175 : vector<8x32xf32>
    %178 = arith.divf %176, %177 : vector<8x32xf32>
    %179 = vector.extract_strided_slice %166 {offsets = [0, 64], sizes = [8, 32], strides = [1, 1]} : vector<8x128xf32> to vector<8x32xf32>
    %180 = math.tanh %179 : vector<8x32xf32>
    %181 = vector.extract_strided_slice %166 {offsets = [0, 96], sizes = [8, 32], strides = [1, 1]} : vector<8x128xf32> to vector<8x32xf32>
    %182 = arith.negf %181 : vector<8x32xf32>
    %183 = math.exp %182 : vector<8x32xf32>
    %cst_55 = arith.constant 1.000000e+00 : f32
    %184 = vector.broadcast %cst_55 : f32 to vector<8x32xf32>
    %185 = arith.addf %184, %183 : vector<8x32xf32>
    %186 = arith.divf %184, %185 : vector<8x32xf32>
    %187 = arith.mulf %178, %132 : vector<8x32xf32>
    %188 = arith.mulf %172, %180 : vector<8x32xf32>
    %189 = arith.addf %187, %188 : vector<8x32xf32>
    %190 = math.tanh %189 : vector<8x32xf32>
    %191 = arith.mulf %186, %190 : vector<8x32xf32>
    %c24 = arith.constant 24 : index
    %c0_56 = arith.constant 0 : index
    %192 = vector.load %arg10[%c24, %c0_56] : memref<64x128xf32, #tpu.memory_space<vmem>>, vector<8x128xf32>
    %cst_57 = arith.constant dense<0.000000e+00> : vector<8x128xf32>
    %193 = tpu.matmul %162, %11, %cst_57 {dimension_numbers = #tpu.dot_dimension_numbers<[1], [0], [0], [1], [0, 0, 1, 1], [], []>} : vector<8x32xf32>, vector<32x128xf32>, vector<8x128xf32> -> vector<8x128xf32>
    %194 = arith.addf %192, %193 : vector<8x128xf32>
    %195 = vector.extract_strided_slice %194 {offsets = [0, 0], sizes = [8, 32], strides = [1, 1]} : vector<8x128xf32> to vector<8x32xf32>
    %196 = arith.negf %195 : vector<8x32xf32>
    %197 = math.exp %196 : vector<8x32xf32>
    %cst_58 = arith.constant 1.000000e+00 : f32
    %198 = vector.broadcast %cst_58 : f32 to vector<8x32xf32>
    %199 = arith.addf %198, %197 : vector<8x32xf32>
    %200 = arith.divf %198, %199 : vector<8x32xf32>
    %201 = vector.extract_strided_slice %194 {offsets = [0, 32], sizes = [8, 32], strides = [1, 1]} : vector<8x128xf32> to vector<8x32xf32>
    %202 = arith.negf %201 : vector<8x32xf32>
    %203 = math.exp %202 : vector<8x32xf32>
    %cst_59 = arith.constant 1.000000e+00 : f32
    %204 = vector.broadcast %cst_59 : f32 to vector<8x32xf32>
    %205 = arith.addf %204, %203 : vector<8x32xf32>
    %206 = arith.divf %204, %205 : vector<8x32xf32>
    %207 = vector.extract_strided_slice %194 {offsets = [0, 64], sizes = [8, 32], strides = [1, 1]} : vector<8x128xf32> to vector<8x32xf32>
    %208 = math.tanh %207 : vector<8x32xf32>
    %209 = vector.extract_strided_slice %194 {offsets = [0, 96], sizes = [8, 32], strides = [1, 1]} : vector<8x128xf32> to vector<8x32xf32>
    %210 = arith.negf %209 : vector<8x32xf32>
    %211 = math.exp %210 : vector<8x32xf32>
    %cst_60 = arith.constant 1.000000e+00 : f32
    %212 = vector.broadcast %cst_60 : f32 to vector<8x32xf32>
    %213 = arith.addf %212, %211 : vector<8x32xf32>
    %214 = arith.divf %212, %213 : vector<8x32xf32>
    %215 = arith.mulf %206, %160 : vector<8x32xf32>
    %216 = arith.mulf %200, %208 : vector<8x32xf32>
    %217 = arith.addf %215, %216 : vector<8x32xf32>
    %218 = math.tanh %217 : vector<8x32xf32>
    %219 = arith.mulf %214, %218 : vector<8x32xf32>
    %cst_61 = arith.constant dense<0.000000e+00> : vector<8x128xf32>
    %220 = tpu.matmul %219, %12, %cst_61 {dimension_numbers = #tpu.dot_dimension_numbers<[1], [0], [0], [1], [0, 0, 1, 1], [], []>} : vector<8x32xf32>, vector<32x128xf32>, vector<8x128xf32> -> vector<8x128xf32>
    %cst_62 = arith.constant dense<0.000000e+00> : vector<8x128xf32>
    %221 = tpu.matmul %191, %13, %cst_62 {dimension_numbers = #tpu.dot_dimension_numbers<[1], [0], [0], [1], [0, 0, 1, 1], [], []>} : vector<8x32xf32>, vector<32x128xf32>, vector<8x128xf32> -> vector<8x128xf32>
    %222 = arith.addf %220, %221 : vector<8x128xf32>
    %223 = arith.addf %222, %16 : vector<8x128xf32>
    %224 = vector.extract_strided_slice %223 {offsets = [0, 0], sizes = [8, 32], strides = [1, 1]} : vector<8x128xf32> to vector<8x32xf32>
    %225 = arith.negf %224 : vector<8x32xf32>
    %226 = math.exp %225 : vector<8x32xf32>
    %cst_63 = arith.constant 1.000000e+00 : f32
    %227 = vector.broadcast %cst_63 : f32 to vector<8x32xf32>
    %228 = arith.addf %227, %226 : vector<8x32xf32>
    %229 = arith.divf %227, %228 : vector<8x32xf32>
    %230 = vector.extract_strided_slice %223 {offsets = [0, 32], sizes = [8, 32], strides = [1, 1]} : vector<8x128xf32> to vector<8x32xf32>
    %231 = arith.negf %230 : vector<8x32xf32>
    %232 = math.exp %231 : vector<8x32xf32>
    %cst_64 = arith.constant 1.000000e+00 : f32
    %233 = vector.broadcast %cst_64 : f32 to vector<8x32xf32>
    %234 = arith.addf %233, %232 : vector<8x32xf32>
    %235 = arith.divf %233, %234 : vector<8x32xf32>
    %236 = vector.extract_strided_slice %223 {offsets = [0, 64], sizes = [8, 32], strides = [1, 1]} : vector<8x128xf32> to vector<8x32xf32>
    %237 = math.tanh %236 : vector<8x32xf32>
    %238 = vector.extract_strided_slice %223 {offsets = [0, 96], sizes = [8, 32], strides = [1, 1]} : vector<8x128xf32> to vector<8x32xf32>
    %239 = arith.negf %238 : vector<8x32xf32>
    %240 = math.exp %239 : vector<8x32xf32>
    %cst_65 = arith.constant 1.000000e+00 : f32
    %241 = vector.broadcast %cst_65 : f32 to vector<8x32xf32>
    %242 = arith.addf %241, %240 : vector<8x32xf32>
    %243 = arith.divf %241, %242 : vector<8x32xf32>
    %244 = arith.mulf %235, %189 : vector<8x32xf32>
    %245 = arith.mulf %229, %237 : vector<8x32xf32>
    %246 = arith.addf %244, %245 : vector<8x32xf32>
    %247 = math.tanh %246 : vector<8x32xf32>
    %248 = arith.mulf %243, %247 : vector<8x32xf32>
    %c32 = arith.constant 32 : index
    %c0_66 = arith.constant 0 : index
    %249 = vector.load %arg10[%c32, %c0_66] : memref<64x128xf32, #tpu.memory_space<vmem>>, vector<8x128xf32>
    %cst_67 = arith.constant dense<0.000000e+00> : vector<8x128xf32>
    %250 = tpu.matmul %219, %11, %cst_67 {dimension_numbers = #tpu.dot_dimension_numbers<[1], [0], [0], [1], [0, 0, 1, 1], [], []>} : vector<8x32xf32>, vector<32x128xf32>, vector<8x128xf32> -> vector<8x128xf32>
    %251 = arith.addf %249, %250 : vector<8x128xf32>
    %252 = vector.extract_strided_slice %251 {offsets = [0, 0], sizes = [8, 32], strides = [1, 1]} : vector<8x128xf32> to vector<8x32xf32>
    %253 = arith.negf %252 : vector<8x32xf32>
    %254 = math.exp %253 : vector<8x32xf32>
    %cst_68 = arith.constant 1.000000e+00 : f32
    %255 = vector.broadcast %cst_68 : f32 to vector<8x32xf32>
    %256 = arith.addf %255, %254 : vector<8x32xf32>
    %257 = arith.divf %255, %256 : vector<8x32xf32>
    %258 = vector.extract_strided_slice %251 {offsets = [0, 32], sizes = [8, 32], strides = [1, 1]} : vector<8x128xf32> to vector<8x32xf32>
    %259 = arith.negf %258 : vector<8x32xf32>
    %260 = math.exp %259 : vector<8x32xf32>
    %cst_69 = arith.constant 1.000000e+00 : f32
    %261 = vector.broadcast %cst_69 : f32 to vector<8x32xf32>
    %262 = arith.addf %261, %260 : vector<8x32xf32>
    %263 = arith.divf %261, %262 : vector<8x32xf32>
    %264 = vector.extract_strided_slice %251 {offsets = [0, 64], sizes = [8, 32], strides = [1, 1]} : vector<8x128xf32> to vector<8x32xf32>
    %265 = math.tanh %264 : vector<8x32xf32>
    %266 = vector.extract_strided_slice %251 {offsets = [0, 96], sizes = [8, 32], strides = [1, 1]} : vector<8x128xf32> to vector<8x32xf32>
    %267 = arith.negf %266 : vector<8x32xf32>
    %268 = math.exp %267 : vector<8x32xf32>
    %cst_70 = arith.constant 1.000000e+00 : f32
    %269 = vector.broadcast %cst_70 : f32 to vector<8x32xf32>
    %270 = arith.addf %269, %268 : vector<8x32xf32>
    %271 = arith.divf %269, %270 : vector<8x32xf32>
    %272 = arith.mulf %263, %217 : vector<8x32xf32>
    %273 = arith.mulf %257, %265 : vector<8x32xf32>
    %274 = arith.addf %272, %273 : vector<8x32xf32>
    %275 = math.tanh %274 : vector<8x32xf32>
    %276 = arith.mulf %271, %275 : vector<8x32xf32>
    %cst_71 = arith.constant dense<0.000000e+00> : vector<8x128xf32>
    %277 = tpu.matmul %276, %12, %cst_71 {dimension_numbers = #tpu.dot_dimension_numbers<[1], [0], [0], [1], [0, 0, 1, 1], [], []>} : vector<8x32xf32>, vector<32x128xf32>, vector<8x128xf32> -> vector<8x128xf32>
    %cst_72 = arith.constant dense<0.000000e+00> : vector<8x128xf32>
    %278 = tpu.matmul %248, %13, %cst_72 {dimension_numbers = #tpu.dot_dimension_numbers<[1], [0], [0], [1], [0, 0, 1, 1], [], []>} : vector<8x32xf32>, vector<32x128xf32>, vector<8x128xf32> -> vector<8x128xf32>
    %279 = arith.addf %277, %278 : vector<8x128xf32>
    %280 = arith.addf %279, %16 : vector<8x128xf32>
    %281 = vector.extract_strided_slice %280 {offsets = [0, 0], sizes = [8, 32], strides = [1, 1]} : vector<8x128xf32> to vector<8x32xf32>
    %282 = arith.negf %281 : vector<8x32xf32>
    %283 = math.exp %282 : vector<8x32xf32>
    %cst_73 = arith.constant 1.000000e+00 : f32
    %284 = vector.broadcast %cst_73 : f32 to vector<8x32xf32>
    %285 = arith.addf %284, %283 : vector<8x32xf32>
    %286 = arith.divf %284, %285 : vector<8x32xf32>
    %287 = vector.extract_strided_slice %280 {offsets = [0, 32], sizes = [8, 32], strides = [1, 1]} : vector<8x128xf32> to vector<8x32xf32>
    %288 = arith.negf %287 : vector<8x32xf32>
    %289 = math.exp %288 : vector<8x32xf32>
    %cst_74 = arith.constant 1.000000e+00 : f32
    %290 = vector.broadcast %cst_74 : f32 to vector<8x32xf32>
    %291 = arith.addf %290, %289 : vector<8x32xf32>
    %292 = arith.divf %290, %291 : vector<8x32xf32>
    %293 = vector.extract_strided_slice %280 {offsets = [0, 64], sizes = [8, 32], strides = [1, 1]} : vector<8x128xf32> to vector<8x32xf32>
    %294 = math.tanh %293 : vector<8x32xf32>
    %295 = vector.extract_strided_slice %280 {offsets = [0, 96], sizes = [8, 32], strides = [1, 1]} : vector<8x128xf32> to vector<8x32xf32>
    %296 = arith.negf %295 : vector<8x32xf32>
    %297 = math.exp %296 : vector<8x32xf32>
    %cst_75 = arith.constant 1.000000e+00 : f32
    %298 = vector.broadcast %cst_75 : f32 to vector<8x32xf32>
    %299 = arith.addf %298, %297 : vector<8x32xf32>
    %300 = arith.divf %298, %299 : vector<8x32xf32>
    %301 = arith.mulf %292, %246 : vector<8x32xf32>
    %302 = arith.mulf %286, %294 : vector<8x32xf32>
    %303 = arith.addf %301, %302 : vector<8x32xf32>
    %304 = math.tanh %303 : vector<8x32xf32>
    %305 = arith.mulf %300, %304 : vector<8x32xf32>
    %c40 = arith.constant 40 : index
    %c0_76 = arith.constant 0 : index
    %306 = vector.load %arg10[%c40, %c0_76] : memref<64x128xf32, #tpu.memory_space<vmem>>, vector<8x128xf32>
    %cst_77 = arith.constant dense<0.000000e+00> : vector<8x128xf32>
    %307 = tpu.matmul %276, %11, %cst_77 {dimension_numbers = #tpu.dot_dimension_numbers<[1], [0], [0], [1], [0, 0, 1, 1], [], []>} : vector<8x32xf32>, vector<32x128xf32>, vector<8x128xf32> -> vector<8x128xf32>
    %308 = arith.addf %306, %307 : vector<8x128xf32>
    %309 = vector.extract_strided_slice %308 {offsets = [0, 0], sizes = [8, 32], strides = [1, 1]} : vector<8x128xf32> to vector<8x32xf32>
    %310 = arith.negf %309 : vector<8x32xf32>
    %311 = math.exp %310 : vector<8x32xf32>
    %cst_78 = arith.constant 1.000000e+00 : f32
    %312 = vector.broadcast %cst_78 : f32 to vector<8x32xf32>
    %313 = arith.addf %312, %311 : vector<8x32xf32>
    %314 = arith.divf %312, %313 : vector<8x32xf32>
    %315 = vector.extract_strided_slice %308 {offsets = [0, 32], sizes = [8, 32], strides = [1, 1]} : vector<8x128xf32> to vector<8x32xf32>
    %316 = arith.negf %315 : vector<8x32xf32>
    %317 = math.exp %316 : vector<8x32xf32>
    %cst_79 = arith.constant 1.000000e+00 : f32
    %318 = vector.broadcast %cst_79 : f32 to vector<8x32xf32>
    %319 = arith.addf %318, %317 : vector<8x32xf32>
    %320 = arith.divf %318, %319 : vector<8x32xf32>
    %321 = vector.extract_strided_slice %308 {offsets = [0, 64], sizes = [8, 32], strides = [1, 1]} : vector<8x128xf32> to vector<8x32xf32>
    %322 = math.tanh %321 : vector<8x32xf32>
    %323 = vector.extract_strided_slice %308 {offsets = [0, 96], sizes = [8, 32], strides = [1, 1]} : vector<8x128xf32> to vector<8x32xf32>
    %324 = arith.negf %323 : vector<8x32xf32>
    %325 = math.exp %324 : vector<8x32xf32>
    %cst_80 = arith.constant 1.000000e+00 : f32
    %326 = vector.broadcast %cst_80 : f32 to vector<8x32xf32>
    %327 = arith.addf %326, %325 : vector<8x32xf32>
    %328 = arith.divf %326, %327 : vector<8x32xf32>
    %329 = arith.mulf %320, %274 : vector<8x32xf32>
    %330 = arith.mulf %314, %322 : vector<8x32xf32>
    %331 = arith.addf %329, %330 : vector<8x32xf32>
    %332 = math.tanh %331 : vector<8x32xf32>
    %333 = arith.mulf %328, %332 : vector<8x32xf32>
    %cst_81 = arith.constant dense<0.000000e+00> : vector<8x128xf32>
    %334 = tpu.matmul %333, %12, %cst_81 {dimension_numbers = #tpu.dot_dimension_numbers<[1], [0], [0], [1], [0, 0, 1, 1], [], []>} : vector<8x32xf32>, vector<32x128xf32>, vector<8x128xf32> -> vector<8x128xf32>
    %cst_82 = arith.constant dense<0.000000e+00> : vector<8x128xf32>
    %335 = tpu.matmul %305, %13, %cst_82 {dimension_numbers = #tpu.dot_dimension_numbers<[1], [0], [0], [1], [0, 0, 1, 1], [], []>} : vector<8x32xf32>, vector<32x128xf32>, vector<8x128xf32> -> vector<8x128xf32>
    %336 = arith.addf %334, %335 : vector<8x128xf32>
    %337 = arith.addf %336, %16 : vector<8x128xf32>
    %338 = vector.extract_strided_slice %337 {offsets = [0, 0], sizes = [8, 32], strides = [1, 1]} : vector<8x128xf32> to vector<8x32xf32>
    %339 = arith.negf %338 : vector<8x32xf32>
    %340 = math.exp %339 : vector<8x32xf32>
    %cst_83 = arith.constant 1.000000e+00 : f32
    %341 = vector.broadcast %cst_83 : f32 to vector<8x32xf32>
    %342 = arith.addf %341, %340 : vector<8x32xf32>
    %343 = arith.divf %341, %342 : vector<8x32xf32>
    %344 = vector.extract_strided_slice %337 {offsets = [0, 32], sizes = [8, 32], strides = [1, 1]} : vector<8x128xf32> to vector<8x32xf32>
    %345 = arith.negf %344 : vector<8x32xf32>
    %346 = math.exp %345 : vector<8x32xf32>
    %cst_84 = arith.constant 1.000000e+00 : f32
    %347 = vector.broadcast %cst_84 : f32 to vector<8x32xf32>
    %348 = arith.addf %347, %346 : vector<8x32xf32>
    %349 = arith.divf %347, %348 : vector<8x32xf32>
    %350 = vector.extract_strided_slice %337 {offsets = [0, 64], sizes = [8, 32], strides = [1, 1]} : vector<8x128xf32> to vector<8x32xf32>
    %351 = math.tanh %350 : vector<8x32xf32>
    %352 = vector.extract_strided_slice %337 {offsets = [0, 96], sizes = [8, 32], strides = [1, 1]} : vector<8x128xf32> to vector<8x32xf32>
    %353 = arith.negf %352 : vector<8x32xf32>
    %354 = math.exp %353 : vector<8x32xf32>
    %cst_85 = arith.constant 1.000000e+00 : f32
    %355 = vector.broadcast %cst_85 : f32 to vector<8x32xf32>
    %356 = arith.addf %355, %354 : vector<8x32xf32>
    %357 = arith.divf %355, %356 : vector<8x32xf32>
    %358 = arith.mulf %349, %303 : vector<8x32xf32>
    %359 = arith.mulf %343, %351 : vector<8x32xf32>
    %360 = arith.addf %358, %359 : vector<8x32xf32>
    %361 = math.tanh %360 : vector<8x32xf32>
    %362 = arith.mulf %357, %361 : vector<8x32xf32>
    %c48 = arith.constant 48 : index
    %c0_86 = arith.constant 0 : index
    %363 = vector.load %arg10[%c48, %c0_86] : memref<64x128xf32, #tpu.memory_space<vmem>>, vector<8x128xf32>
    %cst_87 = arith.constant dense<0.000000e+00> : vector<8x128xf32>
    %364 = tpu.matmul %333, %11, %cst_87 {dimension_numbers = #tpu.dot_dimension_numbers<[1], [0], [0], [1], [0, 0, 1, 1], [], []>} : vector<8x32xf32>, vector<32x128xf32>, vector<8x128xf32> -> vector<8x128xf32>
    %365 = arith.addf %363, %364 : vector<8x128xf32>
    %366 = vector.extract_strided_slice %365 {offsets = [0, 0], sizes = [8, 32], strides = [1, 1]} : vector<8x128xf32> to vector<8x32xf32>
    %367 = arith.negf %366 : vector<8x32xf32>
    %368 = math.exp %367 : vector<8x32xf32>
    %cst_88 = arith.constant 1.000000e+00 : f32
    %369 = vector.broadcast %cst_88 : f32 to vector<8x32xf32>
    %370 = arith.addf %369, %368 : vector<8x32xf32>
    %371 = arith.divf %369, %370 : vector<8x32xf32>
    %372 = vector.extract_strided_slice %365 {offsets = [0, 32], sizes = [8, 32], strides = [1, 1]} : vector<8x128xf32> to vector<8x32xf32>
    %373 = arith.negf %372 : vector<8x32xf32>
    %374 = math.exp %373 : vector<8x32xf32>
    %cst_89 = arith.constant 1.000000e+00 : f32
    %375 = vector.broadcast %cst_89 : f32 to vector<8x32xf32>
    %376 = arith.addf %375, %374 : vector<8x32xf32>
    %377 = arith.divf %375, %376 : vector<8x32xf32>
    %378 = vector.extract_strided_slice %365 {offsets = [0, 64], sizes = [8, 32], strides = [1, 1]} : vector<8x128xf32> to vector<8x32xf32>
    %379 = math.tanh %378 : vector<8x32xf32>
    %380 = vector.extract_strided_slice %365 {offsets = [0, 96], sizes = [8, 32], strides = [1, 1]} : vector<8x128xf32> to vector<8x32xf32>
    %381 = arith.negf %380 : vector<8x32xf32>
    %382 = math.exp %381 : vector<8x32xf32>
    %cst_90 = arith.constant 1.000000e+00 : f32
    %383 = vector.broadcast %cst_90 : f32 to vector<8x32xf32>
    %384 = arith.addf %383, %382 : vector<8x32xf32>
    %385 = arith.divf %383, %384 : vector<8x32xf32>
    %386 = arith.mulf %377, %331 : vector<8x32xf32>
    %387 = arith.mulf %371, %379 : vector<8x32xf32>
    %388 = arith.addf %386, %387 : vector<8x32xf32>
    %389 = math.tanh %388 : vector<8x32xf32>
    %390 = arith.mulf %385, %389 : vector<8x32xf32>
    %cst_91 = arith.constant dense<0.000000e+00> : vector<8x128xf32>
    %391 = tpu.matmul %390, %12, %cst_91 {dimension_numbers = #tpu.dot_dimension_numbers<[1], [0], [0], [1], [0, 0, 1, 1], [], []>} : vector<8x32xf32>, vector<32x128xf32>, vector<8x128xf32> -> vector<8x128xf32>
    %cst_92 = arith.constant dense<0.000000e+00> : vector<8x128xf32>
    %392 = tpu.matmul %362, %13, %cst_92 {dimension_numbers = #tpu.dot_dimension_numbers<[1], [0], [0], [1], [0, 0, 1, 1], [], []>} : vector<8x32xf32>, vector<32x128xf32>, vector<8x128xf32> -> vector<8x128xf32>
    %393 = arith.addf %391, %392 : vector<8x128xf32>
    %394 = arith.addf %393, %16 : vector<8x128xf32>
    %395 = vector.extract_strided_slice %394 {offsets = [0, 0], sizes = [8, 32], strides = [1, 1]} : vector<8x128xf32> to vector<8x32xf32>
    %396 = arith.negf %395 : vector<8x32xf32>
    %397 = math.exp %396 : vector<8x32xf32>
    %cst_93 = arith.constant 1.000000e+00 : f32
    %398 = vector.broadcast %cst_93 : f32 to vector<8x32xf32>
    %399 = arith.addf %398, %397 : vector<8x32xf32>
    %400 = arith.divf %398, %399 : vector<8x32xf32>
    %401 = vector.extract_strided_slice %394 {offsets = [0, 32], sizes = [8, 32], strides = [1, 1]} : vector<8x128xf32> to vector<8x32xf32>
    %402 = arith.negf %401 : vector<8x32xf32>
    %403 = math.exp %402 : vector<8x32xf32>
    %cst_94 = arith.constant 1.000000e+00 : f32
    %404 = vector.broadcast %cst_94 : f32 to vector<8x32xf32>
    %405 = arith.addf %404, %403 : vector<8x32xf32>
    %406 = arith.divf %404, %405 : vector<8x32xf32>
    %407 = vector.extract_strided_slice %394 {offsets = [0, 64], sizes = [8, 32], strides = [1, 1]} : vector<8x128xf32> to vector<8x32xf32>
    %408 = math.tanh %407 : vector<8x32xf32>
    %409 = vector.extract_strided_slice %394 {offsets = [0, 96], sizes = [8, 32], strides = [1, 1]} : vector<8x128xf32> to vector<8x32xf32>
    %410 = arith.negf %409 : vector<8x32xf32>
    %411 = math.exp %410 : vector<8x32xf32>
    %cst_95 = arith.constant 1.000000e+00 : f32
    %412 = vector.broadcast %cst_95 : f32 to vector<8x32xf32>
    %413 = arith.addf %412, %411 : vector<8x32xf32>
    %414 = arith.divf %412, %413 : vector<8x32xf32>
    %415 = arith.mulf %406, %360 : vector<8x32xf32>
    %416 = arith.mulf %400, %408 : vector<8x32xf32>
    %417 = arith.addf %415, %416 : vector<8x32xf32>
    %418 = math.tanh %417 : vector<8x32xf32>
    %419 = arith.mulf %414, %418 : vector<8x32xf32>
    %c56 = arith.constant 56 : index
    %c0_96 = arith.constant 0 : index
    %420 = vector.load %arg10[%c56, %c0_96] : memref<64x128xf32, #tpu.memory_space<vmem>>, vector<8x128xf32>
    %cst_97 = arith.constant dense<0.000000e+00> : vector<8x128xf32>
    %421 = tpu.matmul %390, %11, %cst_97 {dimension_numbers = #tpu.dot_dimension_numbers<[1], [0], [0], [1], [0, 0, 1, 1], [], []>} : vector<8x32xf32>, vector<32x128xf32>, vector<8x128xf32> -> vector<8x128xf32>
    %422 = arith.addf %420, %421 : vector<8x128xf32>
    %423 = vector.extract_strided_slice %422 {offsets = [0, 0], sizes = [8, 32], strides = [1, 1]} : vector<8x128xf32> to vector<8x32xf32>
    %424 = arith.negf %423 : vector<8x32xf32>
    %425 = math.exp %424 : vector<8x32xf32>
    %cst_98 = arith.constant 1.000000e+00 : f32
    %426 = vector.broadcast %cst_98 : f32 to vector<8x32xf32>
    %427 = arith.addf %426, %425 : vector<8x32xf32>
    %428 = arith.divf %426, %427 : vector<8x32xf32>
    %429 = vector.extract_strided_slice %422 {offsets = [0, 32], sizes = [8, 32], strides = [1, 1]} : vector<8x128xf32> to vector<8x32xf32>
    %430 = arith.negf %429 : vector<8x32xf32>
    %431 = math.exp %430 : vector<8x32xf32>
    %cst_99 = arith.constant 1.000000e+00 : f32
    %432 = vector.broadcast %cst_99 : f32 to vector<8x32xf32>
    %433 = arith.addf %432, %431 : vector<8x32xf32>
    %434 = arith.divf %432, %433 : vector<8x32xf32>
    %435 = vector.extract_strided_slice %422 {offsets = [0, 64], sizes = [8, 32], strides = [1, 1]} : vector<8x128xf32> to vector<8x32xf32>
    %436 = math.tanh %435 : vector<8x32xf32>
    %437 = vector.extract_strided_slice %422 {offsets = [0, 96], sizes = [8, 32], strides = [1, 1]} : vector<8x128xf32> to vector<8x32xf32>
    %438 = arith.negf %437 : vector<8x32xf32>
    %439 = math.exp %438 : vector<8x32xf32>
    %cst_100 = arith.constant 1.000000e+00 : f32
    %440 = vector.broadcast %cst_100 : f32 to vector<8x32xf32>
    %441 = arith.addf %440, %439 : vector<8x32xf32>
    %442 = arith.divf %440, %441 : vector<8x32xf32>
    %443 = arith.mulf %434, %388 : vector<8x32xf32>
    %444 = arith.mulf %428, %436 : vector<8x32xf32>
    %445 = arith.addf %443, %444 : vector<8x32xf32>
    %446 = math.tanh %445 : vector<8x32xf32>
    %447 = arith.mulf %442, %446 : vector<8x32xf32>
    %cst_101 = arith.constant dense<0.000000e+00> : vector<8x128xf32>
    %448 = tpu.matmul %447, %12, %cst_101 {dimension_numbers = #tpu.dot_dimension_numbers<[1], [0], [0], [1], [0, 0, 1, 1], [], []>} : vector<8x32xf32>, vector<32x128xf32>, vector<8x128xf32> -> vector<8x128xf32>
    %cst_102 = arith.constant dense<0.000000e+00> : vector<8x128xf32>
    %449 = tpu.matmul %419, %13, %cst_102 {dimension_numbers = #tpu.dot_dimension_numbers<[1], [0], [0], [1], [0, 0, 1, 1], [], []>} : vector<8x32xf32>, vector<32x128xf32>, vector<8x128xf32> -> vector<8x128xf32>
    %450 = arith.addf %448, %449 : vector<8x128xf32>
    %451 = arith.addf %450, %16 : vector<8x128xf32>
    %452 = vector.extract_strided_slice %451 {offsets = [0, 0], sizes = [8, 32], strides = [1, 1]} : vector<8x128xf32> to vector<8x32xf32>
    %453 = arith.negf %452 : vector<8x32xf32>
    %454 = math.exp %453 : vector<8x32xf32>
    %cst_103 = arith.constant 1.000000e+00 : f32
    %455 = vector.broadcast %cst_103 : f32 to vector<8x32xf32>
    %456 = arith.addf %455, %454 : vector<8x32xf32>
    %457 = arith.divf %455, %456 : vector<8x32xf32>
    %458 = vector.extract_strided_slice %451 {offsets = [0, 32], sizes = [8, 32], strides = [1, 1]} : vector<8x128xf32> to vector<8x32xf32>
    %459 = arith.negf %458 : vector<8x32xf32>
    %460 = math.exp %459 : vector<8x32xf32>
    %cst_104 = arith.constant 1.000000e+00 : f32
    %461 = vector.broadcast %cst_104 : f32 to vector<8x32xf32>
    %462 = arith.addf %461, %460 : vector<8x32xf32>
    %463 = arith.divf %461, %462 : vector<8x32xf32>
    %464 = vector.extract_strided_slice %451 {offsets = [0, 64], sizes = [8, 32], strides = [1, 1]} : vector<8x128xf32> to vector<8x32xf32>
    %465 = math.tanh %464 : vector<8x32xf32>
    %466 = vector.extract_strided_slice %451 {offsets = [0, 96], sizes = [8, 32], strides = [1, 1]} : vector<8x128xf32> to vector<8x32xf32>
    %467 = arith.negf %466 : vector<8x32xf32>
    %468 = math.exp %467 : vector<8x32xf32>
    %cst_105 = arith.constant 1.000000e+00 : f32
    %469 = vector.broadcast %cst_105 : f32 to vector<8x32xf32>
    %470 = arith.addf %469, %468 : vector<8x32xf32>
    %471 = arith.divf %469, %470 : vector<8x32xf32>
    %472 = arith.mulf %463, %417 : vector<8x32xf32>
    %473 = arith.mulf %457, %465 : vector<8x32xf32>
    %474 = arith.addf %472, %473 : vector<8x32xf32>
    %475 = math.tanh %474 : vector<8x32xf32>
    %476 = arith.mulf %471, %475 : vector<8x32xf32>
    %c0_106 = arith.constant 0 : index
    %c0_107 = arith.constant 0 : index
    %477 = vector.load %arg11[%c0_106, %c0_107] : memref<8x32xf32, #tpu.memory_space<vmem>>, vector<8x32xf32>
    tpu.vector_store %arg11[%c0_106, %c0_107], %447 {strides = array<i32>} : memref<8x32xf32, #tpu.memory_space<vmem>>, vector<8x32xf32>,
    %c0_108 = arith.constant 0 : index
    %c0_109 = arith.constant 0 : index
    %478 = vector.load %arg12[%c0_108, %c0_109] : memref<8x32xf32, #tpu.memory_space<vmem>>, vector<8x32xf32>
    tpu.vector_store %arg12[%c0_108, %c0_109], %445 {strides = array<i32>} : memref<8x32xf32, #tpu.memory_space<vmem>>, vector<8x32xf32>,
    %c0_110 = arith.constant 0 : index
    %c0_111 = arith.constant 0 : index
    %479 = vector.load %arg13[%c0_110, %c0_111] : memref<8x32xf32, #tpu.memory_space<vmem>>, vector<8x32xf32>
    tpu.vector_store %arg13[%c0_110, %c0_111], %476 {strides = array<i32>} : memref<8x32xf32, #tpu.memory_space<vmem>>, vector<8x32xf32>,
    %c0_112 = arith.constant 0 : index
    %c0_113 = arith.constant 0 : index
    %480 = vector.load %arg14[%c0_112, %c0_113] : memref<8x32xf32, #tpu.memory_space<vmem>>, vector<8x32xf32>
    tpu.vector_store %arg14[%c0_112, %c0_113], %474 {strides = array<i32>} : memref<8x32xf32, #tpu.memory_space<vmem>>, vector<8x32xf32>,
    %c0_i32_114 = arith.constant 0 : i32
    %481 = arith.cmpi eq, %arg0, %c0_i32_114 : i32
    %482 = arith.extui %481 : i1 to i32
    %c0_i32_115 = arith.constant 0 : i32
    %483 = arith.cmpi ne, %482, %c0_i32_115 : i32
    scf.if %483 {
      %c0_116 = arith.constant 0 : index
      %c0_117 = arith.constant 0 : index
      %484 = vector.load %arg8[%c0_116, %c0_117] : memref<2x8xf32, #tpu.memory_space<vmem>>, vector<2x8xf32>
      %cst_118 = arith.constant dense<0.000000e+00> : vector<2x32xf32>
      %485 = tpu.matmul %484, %476, %cst_118 {dimension_numbers = #tpu.dot_dimension_numbers<[1], [0], [0], [1], [0, 0, 1, 1], [], []>} : vector<2x8xf32>, vector<8x32xf32>, vector<2x32xf32> -> vector<2x32xf32>
      %c0_119 = arith.constant 0 : index
      %c0_120 = arith.constant 0 : index
      %486 = vector.load %arg9[%c0_119, %c0_120] : memref<2x32xf32, #tpu.memory_space<vmem>>, vector<2x32xf32>
      tpu.vector_store %arg9[%c0_119, %c0_120], %485 {strides = array<i32>} : memref<2x32xf32, #tpu.memory_space<vmem>>, vector<2x32xf32>,
    } else {
    }
    return
  }
  func.func @transform_0(%arg0: i32) -> (i32, i32, i32) {
    %c0_i32 = arith.constant 0 : i32
    %c0_i32_0 = arith.constant 0 : i32
    %c0_i32_1 = arith.constant 0 : i32
    return %arg0, %c0_i32, %c0_i32_0 : i32, i32, i32
  }
  func.func @transform_1(%arg0: i32) -> (i32, i32) {
    %c0_i32 = arith.constant 0 : i32
    %c0_i32_0 = arith.constant 0 : i32
    %c0_i32_1 = arith.constant 0 : i32
    return %c0_i32, %c0_i32_0 : i32, i32
  }
  func.func @transform_2(%arg0: i32) -> (i32, i32) {
    %c0_i32 = arith.constant 0 : i32
    %c0_i32_0 = arith.constant 0 : i32
    %c0_i32_1 = arith.constant 0 : i32
    return %c0_i32, %c0_i32_0 : i32, i32
  }
  func.func @transform_3(%arg0: i32) -> (i32, i32) {
    %c0_i32 = arith.constant 0 : i32
    %c0_i32_0 = arith.constant 0 : i32
    %c0_i32_1 = arith.constant 0 : i32
    return %c0_i32, %c0_i32_0 : i32, i32
  }
  func.func @transform_4(%arg0: i32) -> (i32, i32) {
    %c0_i32 = arith.constant 0 : i32
    %c0_i32_0 = arith.constant 0 : i32
    %c0_i32_1 = arith.constant 0 : i32
    return %c0_i32, %c0_i32_0 : i32, i32
  }
  func.func @transform_5(%arg0: i32) -> (i32, i32) {
    %c0_i32 = arith.constant 0 : i32
    %c0_i32_0 = arith.constant 0 : i32
    %c0_i32_1 = arith.constant 0 : i32
    return %c0_i32, %c0_i32_0 : i32, i32
  }
  func.func @transform_6(%arg0: i32) -> (i32, i32) {
    %c0_i32 = arith.constant 0 : i32
    %c0_i32_0 = arith.constant 0 : i32
    %c0_i32_1 = arith.constant 0 : i32
    return %c0_i32, %c0_i32_0 : i32, i32
  }
  func.func @transform_7(%arg0: i32) -> (i32, i32) {
    %c0_i32 = arith.constant 0 : i32
    %c0_i32_0 = arith.constant 0 : i32
    %c0_i32_1 = arith.constant 0 : i32
    return %c0_i32, %c0_i32_0 : i32, i32
  }
  func.func @transform_8(%arg0: i32) -> (i32, i32) {
    %c0_i32 = arith.constant 0 : i32
    %c0_i32_0 = arith.constant 0 : i32
    %c0_i32_1 = arith.constant 0 : i32
    return %c0_i32, %c0_i32_0 : i32, i32
  }
}

</mosaic_0001>

<llo_original>
// kernel: tpu_custom_call.1
$region0: #{tpu_custom_call.1}
  #allocation0 [shape = 'u32[]', space=smem, size = 0x4, offset = 0x4, fixed_abs, tag = 'smem constant byte address 0x4 - core index']
  #allocation1 [shape = 'u32[72,128]{1,0:T(1,128)}', space=vmem, size = 0x9000, scoped, tag = 'internal scratch']
  #allocation2 [shape = 'f32[64,128]{1,0:T(8,128)}', space=vmem, size = 0x8000, scoped, tag = 'scratch operand']
  #allocation3 [shape = 'f32[8,32]{1,0:T(8,128)}', space=vmem, size = 0x1000, scoped, tag = 'scratch operand']
  #allocation4 [shape = 'f32[8,32]{1,0:T(8,128)}', space=vmem, size = 0x1000, scoped, tag = 'scratch operand']
  #allocation5 [shape = 'f32[8,32]{1,0:T(8,128)}', space=vmem, size = 0x1000, scoped, tag = 'scratch operand']
  #allocation6 [shape = 'f32[8,32]{1,0:T(8,128)}', space=vmem, size = 0x1000, scoped, tag = 'scratch operand']
  %s0 = inlined_call_operand.vmem [shape: f32[1,64,16], index: 0, kind: input, shape index: {}]
  %s1 = inlined_call_operand.vmem [shape: f32[16,128], index: 1, kind: input, shape index: {}]
  %s2 = inlined_call_operand.vmem [shape: f32[32,128], index: 2, kind: input, shape index: {}]
  %s3 = inlined_call_operand.hbm [shape: f32[1,128], index: 3, kind: input, shape index: {}]
  %s4 = inlined_call_operand.vmem [shape: f32[32,128], index: 4, kind: input, shape index: {}]
  %s5 = inlined_call_operand.hbm [shape: f32[32,128], index: 5, kind: input, shape index: {}]
  %s6 = inlined_call_operand.vmem [shape: f32[1,128], index: 6, kind: input, shape index: {}]
  %s7 = inlined_call_operand.vmem [shape: f32[2,8], index: 7, kind: input, shape index: {}]
  %s8 = inlined_call_operand.hbm [shape: f32[2,32], index: 8, kind: output, shape index: {}]
  %s9 = sld [smem:[#allocation0]]
  $region58: #{tpu_custom_call.1} parent=0
    _
  %s11 = ssub.s32 1, %s9
  %s12 = scalar_select 0, %s11, %s9
  $region1: #{tpu_custom_call.1} parent=0
    #allocation7 [shape = 'u8[512]{0}', space=vmem, size = 0x400, scoped, tag = 'input window, operand 3, single buffered']
    #allocation8 [shape = 's32[1]{0}', space=sflag, size = 0x4, scoped, tag = 'scoped memory for tpu_custom_call.1']
    #allocation9 [shape = 's32[1]{0}', space=sflag, size = 0x4, scoped, tag = 'scoped memory for tpu_custom_call.1']
    #allocation10 [shape = 'u8[16384]{0}', space=vmem, size = 0x4000, scoped, tag = 'input window, operand 5, single buffered']
    #allocation11 [shape = 's32[1]{0}', space=sflag, size = 0x4, scoped, tag = 'scoped memory for tpu_custom_call.1']
    #allocation12 [shape = 'u8[1024]{0}', space=vmem, size = 0x400, scoped, tag = 'output window, operand 0, single buffered']
    %13 = vsyncpa [#allocation8], 0
    %14 = vsyncpa [#allocation11], 0
    %15 = vsyncpa [#allocation9], 0
    // Predicated region
    $region2: #{tpu_custom_call.1} parent=1 // pred_check
      _
    $region3: #{tpu_custom_call.1} parent=1 // pred_check_branch
      %17 = sbr.rel (0) target = $region5
    $region4: #{tpu_custom_call.1} parent=1 // pred_region
      _
    $region5: #{tpu_custom_call.1} parent=1 // pred_fallthru
      _
    // Predicated region
    $region6: #{tpu_custom_call.1} parent=1 // pred_check
      _
    $region7: #{tpu_custom_call.1} parent=1 // pred_check_branch
      %19 = sbr.rel (0) target = $region9
    $region8: #{tpu_custom_call.1} parent=1 // pred_region
      _
    $region9: #{tpu_custom_call.1} parent=1 // pred_fallthru
      _
    // Predicated region
    $region10: #{tpu_custom_call.1} parent=1 // pred_check
      _
    $region11: #{tpu_custom_call.1} parent=1 // pred_check_branch
      %21 = sbr.rel (0) target = $region13
    $region12: #{tpu_custom_call.1} parent=1 // pred_region
      _
    $region13: #{tpu_custom_call.1} parent=1 // pred_fallthru
      _
    // Predicated region
    $region14: #{tpu_custom_call.1} parent=1 // pred_check
      _
    $region15: #{tpu_custom_call.1} parent=1 // pred_check_branch
      %23 = sbr.rel (0) target = $region17
    $region16: #{tpu_custom_call.1} parent=1 // pred_region
      %25 = vsyncadd [#allocation8], 0
      %s27 = sshll.u32 %s3, 4
      %s28 = int_to_ptr.hbm [resolvable:$true] %s27
      %s29 = sshll.u32 [#allocation7], 4
      %s30 = int_to_ptr.vmem [resolvable:$true] %s29
      %32 = dma.hbm_to_vmem [thread:$0]  %s28, 16, %s30, [#allocation8]
    $region17: #{tpu_custom_call.1} parent=1 // pred_fallthru
      _
    // Predicated region
    $region18: #{tpu_custom_call.1} parent=1 // pred_check
      _
    $region19: #{tpu_custom_call.1} parent=1 // pred_check_branch
      %34 = sbr.rel (0) target = $region21
    $region20: #{tpu_custom_call.1} parent=1 // pred_region
      _
    $region21: #{tpu_custom_call.1} parent=1 // pred_fallthru
      _
    // Predicated region
    $region22: #{tpu_custom_call.1} parent=1 // pred_check
      _
    $region23: #{tpu_custom_call.1} parent=1 // pred_check_branch
      %36 = sbr.rel (0) target = $region25
    $region24: #{tpu_custom_call.1} parent=1 // pred_region
      %38 = vsyncadd [#allocation11], 0
      %s39 = sshll.u32 %s5, 4
      %s40 = int_to_ptr.hbm [resolvable:$true] %s39
      %s41 = sshll.u32 [#allocation10], 4
      %s42 = int_to_ptr.vmem [resolvable:$true] %s41
      %47 = dma.hbm_to_vmem [thread:$0]  %s40, 512, %s42, [#allocation11], 128, 128, 8
    $region25: #{tpu_custom_call.1} parent=1 // pred_fallthru
      _
    // Predicated region
    $region26: #{tpu_custom_call.1} parent=1 // pred_check
      _
    $region27: #{tpu_custom_call.1} parent=1 // pred_check_branch
      %49 = sbr.rel (0) target = $region29
    $region28: #{tpu_custom_call.1} parent=1 // pred_region
      _
    $region29: #{tpu_custom_call.1} parent=1 // pred_fallthru
      _
    // Predicated region
    $region30: #{tpu_custom_call.1} parent=1 // pred_check
      _
    $region31: #{tpu_custom_call.1} parent=1 // pred_check_branch
      %51 = sbr.rel (0) target = $region33
    $region32: #{tpu_custom_call.1} parent=1 // pred_region
      _
    $region33: #{tpu_custom_call.1} parent=1 // pred_fallthru
      _
    // Predicated region
    $region34: #{tpu_custom_call.1} parent=1 // pred_check
      _
    $region35: #{tpu_custom_call.1} parent=1 // pred_check_branch
      %53 = sbr.rel (0) target = $region37
    $region36: #{tpu_custom_call.1} parent=1 // pred_region
      %55 = dma.done [#allocation8], 16
    $region37: #{tpu_custom_call.1} parent=1 // pred_fallthru
      _
    // Predicated region
    $region38: #{tpu_custom_call.1} parent=1 // pred_check
      _
    $region39: #{tpu_custom_call.1} parent=1 // pred_check_branch
      %57 = sbr.rel (0) target = $region41
    $region40: #{tpu_custom_call.1} parent=1 // pred_region
      %59 = dma.done [#allocation11], 512
    $region41: #{tpu_custom_call.1} parent=1 // pred_fallthru
      _
    %p60 = scmp.eq.s32.totalorder 0, 0
    // Predicated region
    $region42: #{tpu_custom_call.1} parent=1 // pred_check
      %p61 = pneg %p60
    $region43: #{tpu_custom_call.1} parent=1 // pred_check_branch
      %63 = sbr.rel (%p61) target = $region45
    $region44: #{tpu_custom_call.1} parent=1 // pred_region
      %vm64 = vcmask 261120
      %65 = vst.msk [vmem:[#allocation3] sm:$0xff] %vm64, 0.0
      %66 = vst.msk [vmem:[#allocation4] sm:$0xff] %vm64, 0.0
      %67 = vst.msk [vmem:[#allocation5] sm:$0xff] %vm64, 0.0
      %68 = vst.msk [vmem:[#allocation6] sm:$0xff] %vm64, 0.0
    $region45: #{tpu_custom_call.1} parent=1 // pred_fallthru
      _
    %v69 = vld [vmem:[%s0] sm:$0xff]
    %v70 = vld [vmem:[%s0 + $0x8] sm:$0xff]
    %v71 = vld [vmem:[%s0 + $0x10] sm:$0xff]
    %v72 = vld [vmem:[%s0 + $0x18] sm:$0xff]
    %v73 = vld [vmem:[%s0 + $0x20] sm:$0xff]
    %v74 = vld [vmem:[%s0 + $0x28] sm:$0xff]
    %v75 = vld [vmem:[%s0 + $0x30] sm:$0xff]
    %v76 = vld [vmem:[%s0 + $0x38] sm:$0xff]
    %v77 = vld [vmem:[%s1] sm:$0xff]
    %v78 = vld [vmem:[%s1 + $0x8] sm:$0xff]
    %v79 = vld [vmem:[#allocation7] sm:$0x1]
    %v81 = vperm.slane %v79, 0
    %vm83 = vcmask 130048
    %v85 = vsel %vm83, %v69, 0
    %v88 = vsel %vm83, %v70, 0
    %v91 = vsel %vm83, %v71, 0
    %v94 = vsel %vm83, %v72, 0
    %v97 = vsel %vm83, %v73, 0
    %v100 = vsel %vm83, %v74, 0
    %v103 = vsel %vm83, %v75, 0
    %v106 = vsel %vm83, %v76, 0
    %108 = vmatpush.msra.mxu0 0.0
    %109 = vmatpush.msra.mxu0 0.0
    %110 = vmatpush.msra.mxu0 0.0
    %111 = vmatpush.msra.mxu0 0.0
    %112 = vmatpush.msra.mxu0 0.0
    %113 = vmatpush.msra.mxu0 0.0
    %114 = vmatpush.msra.mxu0 0.0
    %115 = vmatpush.msra.mxu0 0.0
    %116 = vmatpush.msra.mxu0 0.0
    %117 = vmatpush.msra.mxu0 0.0
    %118 = vmatpush.msra.mxu0 0.0
    %119 = vmatpush.msra.mxu0 0.0
    %120 = vmatpush.msra.mxu0 0.0
    %121 = vmatpush.msra.mxu0 0.0
    %122 = vmatpush.msra.mxu0 %v78
    %123 = vmatpush.msra.mxu0 %v77
    %124 = vmatmul.f32.gmra.mxu0 %v85
    %v125 = vpop.f32.mrf.mxu0
    %v126 = vadd.f32 %v81, %v125
    %127 = vmatmul.f32.gmra.mxu0 %v88
    %v128 = vpop.f32.mrf.mxu0
    %v129 = vadd.f32 %v81, %v128
    %130 = vmatmul.f32.gmra.mxu0 %v91
    %v131 = vpop.f32.mrf.mxu0
    %v132 = vadd.f32 %v81, %v131
    %133 = vmatmul.f32.gmra.mxu0 %v94
    %v134 = vpop.f32.mrf.mxu0
    %v135 = vadd.f32 %v81, %v134
    %136 = vmatmul.f32.gmra.mxu0 %v97
    %v137 = vpop.f32.mrf.mxu0
    %v138 = vadd.f32 %v81, %v137
    %139 = vmatmul.f32.gmra.mxu0 %v100
    %v140 = vpop.f32.mrf.mxu0
    %v141 = vadd.f32 %v81, %v140
    %142 = vmatmul.f32.gmra.mxu0 %v103
    %v143 = vpop.f32.mrf.mxu0
    %v144 = vadd.f32 %v81, %v143
    %145 = vmatmul.f32.gmra.mxu0 %v106
    %v146 = vpop.f32.mrf.mxu0
    %v147 = vadd.f32 %v81, %v146
    %148 = vdwg.mxu0
    %149 = vst [vmem:[#allocation2] sm:$0xff] %v126
    %150 = vst [vmem:[#allocation2 + $0x8] sm:$0xff] %v129
    %151 = vst [vmem:[#allocation2 + $0x10] sm:$0xff] %v132
    %152 = vst [vmem:[#allocation2 + $0x18] sm:$0xff] %v135
    %153 = vst [vmem:[#allocation2 + $0x20] sm:$0xff] %v138
    %154 = vst [vmem:[#allocation2 + $0x28] sm:$0xff] %v141
    %155 = vst [vmem:[#allocation2 + $0x30] sm:$0xff] %v144
    %156 = vst [vmem:[#allocation2 + $0x38] sm:$0xff] %v147
    %v157 = vld [vmem:[%s2] sm:$0xff]
    %v158 = vld [vmem:[%s2 + $0x8] sm:$0xff]
    %v159 = vld [vmem:[%s2 + $0x10] sm:$0xff]
    %v160 = vld [vmem:[%s2 + $0x18] sm:$0xff]
    %v161 = vld [vmem:[%s4] sm:$0xff]
    %v162 = vld [vmem:[%s4 + $0x8] sm:$0xff]
    %v163 = vld [vmem:[%s4 + $0x10] sm:$0xff]
    %v164 = vld [vmem:[%s4 + $0x18] sm:$0xff]
    %v165 = vld [vmem:[#allocation10] sm:$0xff]
    %v166 = vld [vmem:[#allocation10 + $0x8] sm:$0xff]
    %v167 = vld [vmem:[#allocation10 + $0x10] sm:$0xff]
    %v168 = vld [vmem:[#allocation10 + $0x18] sm:$0xff]
    %v169 = vld [vmem:[%s6] sm:$0x1]
    %v171 = vperm.slane %v169, 0
    %v173 = vld [vmem:[#allocation3] sm:$0xff]
    %v174 = vld [vmem:[#allocation4] sm:$0xff]
    %v175 = vld [vmem:[#allocation5] sm:$0xff]
    %v176 = vld [vmem:[#allocation6] sm:$0xff]
    %v177 = vld [vmem:[#allocation2] sm:$0xff]
    %vm178 = vcmask 261120
    %v180 = vsel %vm178, %v173, 0
    %182 = vmatpush.msra.mxu0 0.0
    %183 = vmatpush.msra.mxu0 0.0
    %184 = vmatpush.msra.mxu0 0.0
    %185 = vmatpush.msra.mxu0 0.0
    %186 = vmatpush.msra.mxu0 0.0
    %187 = vmatpush.msra.mxu0 0.0
    %188 = vmatpush.msra.mxu0 0.0
    %189 = vmatpush.msra.mxu0 0.0
    %190 = vmatpush.msra.mxu0 0.0
    %191 = vmatpush.msra.mxu0 0.0
    %192 = vmatpush.msra.mxu0 0.0
    %193 = vmatpush.msra.mxu0 0.0
    %194 = vmatpush.msra.mxu0 %v160
    %195 = vmatpush.msra.mxu0 %v159
    %196 = vmatpush.msra.mxu0 %v158
    %197 = vmatpush.msra.mxu0 %v157
    %198 = vmatmul.f32.gmra.mxu0 %v180
    %v199 = vpop.f32.mrf.mxu0
    %v200 = vadd.f32 0.0, %v199
    %201 = vdwg.mxu0
    %v202 = vadd.f32 %v177, %v200
    %v203 = vxor.u32 %v202, 2147483648
    %v204 = vmul.f32 %v203, 1.442695
    %v205 = vpow.pop %v204
    %v206 = vadd.f32 %v205, 1.0
    %v207 = vrcp.pop %v206
    %v208 = vmul.f32 %v206, %v207
    %v209 = vsub.f32 1.0, %v208
    %v210 = vmul.f32 %v207, %v209
    %v211 = vadd.f32 %v207, %v210
    %vm212 = vweird.f32 %v206
    %vm213 = vweird.f32 %v207
    %vm214 = vmor %vm212, %vm213
    %v215 = vsel %vm214, %v207, %v211
    %v216 = vand.u32 2147483647, %v206
    %vm217 = vcmp.eq.f32.partialorder %v216, 8.507059e+37
    %v218 = vand.u32 %v206, 2147483648
    %v219 = vor.u32 1.1754944e-38, %v218
    %v220 = vsel %vm217, %v219, %v215
    %v221 = vmul.f32 1.0, %v220
    %v222 = vtanh.pop %v202
    %224 = vrot.lane.b32.xlu0 %v174, 32
    %v225 = vpop.permute.xlu0 %224
    %v227 = vmul.f32 %v221, %v225
    %229 = vrot.lane.b32.xlu0 %v222, 64
    %v230 = vpop.permute.xlu0 %229
    %v232 = vmul.f32 %v221, %v230
    %234 = vrot.lane.b32.xlu0 %v232, 32
    %v235 = vpop.permute.xlu0 %234
    %v237 = vadd.f32 %v227, %v235
    %v238 = vtanh.pop %v237
    %240 = vrot.lane.b32.xlu0 %v238, 64
    %v241 = vpop.permute.xlu0 %240
    %v243 = vmul.f32 %v221, %v241
    %v245 = vsel %vm178, %v175, 0
    %247 = vmatpush.msra.mxu0 0.0
    %248 = vmatpush.msra.mxu0 0.0
    %249 = vmatpush.msra.mxu0 0.0
    %250 = vmatpush.msra.mxu0 0.0
    %251 = vmatpush.msra.mxu0 0.0
    %252 = vmatpush.msra.mxu0 0.0
    %253 = vmatpush.msra.mxu0 0.0
    %254 = vmatpush.msra.mxu0 0.0
    %255 = vmatpush.msra.mxu0 0.0
    %256 = vmatpush.msra.mxu0 0.0
    %257 = vmatpush.msra.mxu0 0.0
    %258 = vmatpush.msra.mxu0 0.0
    %259 = vmatpush.msra.mxu0 %v168
    %260 = vmatpush.msra.mxu0 %v167
    %261 = vmatpush.msra.mxu0 %v166
    %262 = vmatpush.msra.mxu0 %v165
    %263 = vmatmul.f32.gmra.mxu0 %v245
    %v264 = vpop.f32.mrf.mxu0
    %v265 = vadd.f32 0.0, %v264
    %266 = vdwg.mxu0
    %268 = vrot.lane.b32.xlu0 %v243, 32
    %v269 = vpop.permute.xlu0 %268
    %v270 = vsel %vm178, %v269, 0
    %272 = vmatpush.msra.mxu0 0.0
    %273 = vmatpush.msra.mxu0 0.0
    %274 = vmatpush.msra.mxu0 0.0
    %275 = vmatpush.msra.mxu0 0.0
    %276 = vmatpush.msra.mxu0 0.0
    %277 = vmatpush.msra.mxu0 0.0
    %278 = vmatpush.msra.mxu0 0.0
    %279 = vmatpush.msra.mxu0 0.0
    %280 = vmatpush.msra.mxu0 0.0
    %281 = vmatpush.msra.mxu0 0.0
    %282 = vmatpush.msra.mxu0 0.0
    %283 = vmatpush.msra.mxu0 0.0
    %284 = vmatpush.msra.mxu0 %v164
    %285 = vmatpush.msra.mxu0 %v163
    %286 = vmatpush.msra.mxu0 %v162
    %287 = vmatpush.msra.mxu0 %v161
    %288 = vmatmul.f32.gmra.mxu0 %v270
    %v289 = vpop.f32.mrf.mxu0
    %v290 = vadd.f32 %v265, %v289
    %291 = vdwg.mxu0
    %v292 = vadd.f32 %v290, %v171
    %v293 = vxor.u32 %v292, 2147483648
    %v294 = vmul.f32 %v293, 1.442695
    %v295 = vpow.pop %v294
    %v296 = vadd.f32 %v295, 1.0
    %v297 = vrcp.pop %v296
    %v298 = vmul.f32 %v296, %v297
    %v299 = vsub.f32 1.0, %v298
    %v300 = vmul.f32 %v297, %v299
    %v301 = vadd.f32 %v297, %v300
    %vm302 = vweird.f32 %v296
    %vm303 = vweird.f32 %v297
    %vm304 = vmor %vm302, %vm303
    %v305 = vsel %vm304, %v297, %v301
    %v306 = vand.u32 2147483647, %v296
    %vm307 = vcmp.eq.f32.partialorder %v306, 8.507059e+37
    %v308 = vand.u32 %v296, 2147483648
    %v309 = vor.u32 1.1754944e-38, %v308
    %v310 = vsel %vm307, %v309, %v305
    %v311 = vmul.f32 1.0, %v310
    %v312 = vtanh.pop %v292
    %314 = vrot.lane.b32.xlu0 %v176, 32
    %v315 = vpop.permute.xlu0 %314
    %v317 = vmul.f32 %v311, %v315
    %319 = vrot.lane.b32.xlu0 %v312, 64
    %v320 = vpop.permute.xlu0 %319
    %v322 = vmul.f32 %v311, %v320
    %324 = vrot.lane.b32.xlu0 %v322, 32
    %v325 = vpop.permute.xlu0 %324
    %v327 = vadd.f32 %v317, %v325
    %v328 = vtanh.pop %v327
    %330 = vrot.lane.b32.xlu0 %v328, 64
    %v331 = vpop.permute.xlu0 %330
    %v333 = vmul.f32 %v311, %v331
    %v334 = vld [vmem:[#allocation2 + $0x8] sm:$0xff]
    %335 = vmatpush.msra.mxu0 0.0
    %336 = vmatpush.msra.mxu0 0.0
    %337 = vmatpush.msra.mxu0 0.0
    %338 = vmatpush.msra.mxu0 0.0
    %339 = vmatpush.msra.mxu0 0.0
    %340 = vmatpush.msra.mxu0 0.0
    %341 = vmatpush.msra.mxu0 0.0
    %342 = vmatpush.msra.mxu0 0.0
    %343 = vmatpush.msra.mxu0 0.0
    %344 = vmatpush.msra.mxu0 0.0
    %345 = vmatpush.msra.mxu0 0.0
    %346 = vmatpush.msra.mxu0 0.0
    %347 = vmatpush.msra.mxu0 %v160
    %348 = vmatpush.msra.mxu0 %v159
    %349 = vmatpush.msra.mxu0 %v158
    %350 = vmatpush.msra.mxu0 %v157
    %351 = vmatmul.f32.gmra.mxu0 %v270
    %v352 = vpop.f32.mrf.mxu0
    %v353 = vadd.f32 0.0, %v352
    %354 = vdwg.mxu0
    %v355 = vadd.f32 %v334, %v353
    %v356 = vxor.u32 %v355, 2147483648
    %v357 = vmul.f32 %v356, 1.442695
    %v358 = vpow.pop %v357
    %v359 = vadd.f32 %v358, 1.0
    %v360 = vrcp.pop %v359
    %v361 = vmul.f32 %v359, %v360
    %v362 = vsub.f32 1.0, %v361
    %v363 = vmul.f32 %v360, %v362
    %v364 = vadd.f32 %v360, %v363
    %vm365 = vweird.f32 %v359
    %vm366 = vweird.f32 %v360
    %vm367 = vmor %vm365, %vm366
    %v368 = vsel %vm367, %v360, %v364
    %v369 = vand.u32 2147483647, %v359
    %vm370 = vcmp.eq.f32.partialorder %v369, 8.507059e+37
    %v371 = vand.u32 %v359, 2147483648
    %v372 = vor.u32 1.1754944e-38, %v371
    %v373 = vsel %vm370, %v372, %v368
    %v374 = vmul.f32 1.0, %v373
    %v375 = vtanh.pop %v355
    %v376 = vmul.f32 %v374, %v237
    %378 = vrot.lane.b32.xlu0 %v375, 64
    %v379 = vpop.permute.xlu0 %378
    %v381 = vmul.f32 %v374, %v379
    %383 = vrot.lane.b32.xlu0 %v381, 32
    %v384 = vpop.permute.xlu0 %383
    %v386 = vadd.f32 %v376, %v384
    %v387 = vtanh.pop %v386
    %389 = vrot.lane.b32.xlu0 %v387, 64
    %v390 = vpop.permute.xlu0 %389
    %v392 = vmul.f32 %v374, %v390
    %394 = vrot.lane.b32.xlu0 %v333, 32
    %v395 = vpop.permute.xlu0 %394
    %v396 = vsel %vm178, %v395, 0
    %398 = vmatpush.msra.mxu0 0.0
    %399 = vmatpush.msra.mxu0 0.0
    %400 = vmatpush.msra.mxu0 0.0
    %401 = vmatpush.msra.mxu0 0.0
    %402 = vmatpush.msra.mxu0 0.0
    %403 = vmatpush.msra.mxu0 0.0
    %404 = vmatpush.msra.mxu0 0.0
    %405 = vmatpush.msra.mxu0 0.0
    %406 = vmatpush.msra.mxu0 0.0
    %407 = vmatpush.msra.mxu0 0.0
    %408 = vmatpush.msra.mxu0 0.0
    %409 = vmatpush.msra.mxu0 0.0
    %410 = vmatpush.msra.mxu0 %v168
    %411 = vmatpush.msra.mxu0 %v167
    %412 = vmatpush.msra.mxu0 %v166
    %413 = vmatpush.msra.mxu0 %v165
    %414 = vmatmul.f32.gmra.mxu0 %v396
    %v415 = vpop.f32.mrf.mxu0
    %v416 = vadd.f32 0.0, %v415
    %417 = vdwg.mxu0
    %419 = vrot.lane.b32.xlu0 %v392, 32
    %v420 = vpop.permute.xlu0 %419
    %v421 = vsel %vm178, %v420, 0
    %423 = vmatpush.msra.mxu0 0.0
    %424 = vmatpush.msra.mxu0 0.0
    %425 = vmatpush.msra.mxu0 0.0
    %426 = vmatpush.msra.mxu0 0.0
    %427 = vmatpush.msra.mxu0 0.0
    %428 = vmatpush.msra.mxu0 0.0
    %429 = vmatpush.msra.mxu0 0.0
    %430 = vmatpush.msra.mxu0 0.0
    %431 = vmatpush.msra.mxu0 0.0
    %432 = vmatpush.msra.mxu0 0.0
    %433 = vmatpush.msra.mxu0 0.0
    %434 = vmatpush.msra.mxu0 0.0
    %435 = vmatpush.msra.mxu0 %v164
    %436 = vmatpush.msra.mxu0 %v163
    %437 = vmatpush.msra.mxu0 %v162
    %438 = vmatpush.msra.mxu0 %v161
    %439 = vmatmul.f32.gmra.mxu0 %v421
    %v440 = vpop.f32.mrf.mxu0
    %v441 = vadd.f32 %v416, %v440
    %442 = vdwg.mxu0
    %v443 = vadd.f32 %v441, %v171
    %v444 = vxor.u32 %v443, 2147483648
    %v445 = vmul.f32 %v444, 1.442695
    %v446 = vpow.pop %v445
    %v447 = vadd.f32 %v446, 1.0
    %v448 = vrcp.pop %v447
    %v449 = vmul.f32 %v447, %v448
    %v450 = vsub.f32 1.0, %v449
    %v451 = vmul.f32 %v448, %v450
    %v452 = vadd.f32 %v448, %v451
    %vm453 = vweird.f32 %v447
    %vm454 = vweird.f32 %v448
    %vm455 = vmor %vm453, %vm454
    %v456 = vsel %vm455, %v448, %v452
    %v457 = vand.u32 2147483647, %v447
    %vm458 = vcmp.eq.f32.partialorder %v457, 8.507059e+37
    %v459 = vand.u32 %v447, 2147483648
    %v460 = vor.u32 1.1754944e-38, %v459
    %v461 = vsel %vm458, %v460, %v456
    %v462 = vmul.f32 1.0, %v461
    %v463 = vtanh.pop %v443
    %v464 = vmul.f32 %v462, %v327
    %466 = vrot.lane.b32.xlu0 %v463, 64
    %v467 = vpop.permute.xlu0 %466
    %v469 = vmul.f32 %v462, %v467
    %471 = vrot.lane.b32.xlu0 %v469, 32
    %v472 = vpop.permute.xlu0 %471
    %v474 = vadd.f32 %v464, %v472
    %v475 = vtanh.pop %v474
    %477 = vrot.lane.b32.xlu0 %v475, 64
    %v478 = vpop.permute.xlu0 %477
    %v480 = vmul.f32 %v462, %v478
    %v481 = vld [vmem:[#allocation2 + $0x10] sm:$0xff]
    %482 = vmatpush.msra.mxu0 0.0
    %483 = vmatpush.msra.mxu0 0.0
    %484 = vmatpush.msra.mxu0 0.0
    %485 = vmatpush.msra.mxu0 0.0
    %486 = vmatpush.msra.mxu0 0.0
    %487 = vmatpush.msra.mxu0 0.0
    %488 = vmatpush.msra.mxu0 0.0
    %489 = vmatpush.msra.mxu0 0.0
    %490 = vmatpush.msra.mxu0 0.0
    %491 = vmatpush.msra.mxu0 0.0
    %492 = vmatpush.msra.mxu0 0.0
    %493 = vmatpush.msra.mxu0 0.0
    %494 = vmatpush.msra.mxu0 %v160
    %495 = vmatpush.msra.mxu0 %v159
    %496 = vmatpush.msra.mxu0 %v158
    %497 = vmatpush.msra.mxu0 %v157
    %498 = vmatmul.f32.gmra.mxu0 %v421
    %v499 = vpop.f32.mrf.mxu0
    %v500 = vadd.f32 0.0, %v499
    %501 = vdwg.mxu0
    %v502 = vadd.f32 %v481, %v500
    %v503 = vxor.u32 %v502, 2147483648
    %v504 = vmul.f32 %v503, 1.442695
    %v505 = vpow.pop %v504
    %v506 = vadd.f32 %v505, 1.0
    %v507 = vrcp.pop %v506
    %v508 = vmul.f32 %v506, %v507
    %v509 = vsub.f32 1.0, %v508
    %v510 = vmul.f32 %v507, %v509
    %v511 = vadd.f32 %v507, %v510
    %vm512 = vweird.f32 %v506
    %vm513 = vweird.f32 %v507
    %vm514 = vmor %vm512, %vm513
    %v515 = vsel %vm514, %v507, %v511
    %v516 = vand.u32 2147483647, %v506
    %vm517 = vcmp.eq.f32.partialorder %v516, 8.507059e+37
    %v518 = vand.u32 %v506, 2147483648
    %v519 = vor.u32 1.1754944e-38, %v518
    %v520 = vsel %vm517, %v519, %v515
    %v521 = vmul.f32 1.0, %v520
    %v522 = vtanh.pop %v502
    %v523 = vmul.f32 %v521, %v386
    %525 = vrot.lane.b32.xlu0 %v522, 64
    %v526 = vpop.permute.xlu0 %525
    %v528 = vmul.f32 %v521, %v526
    %530 = vrot.lane.b32.xlu0 %v528, 32
    %v531 = vpop.permute.xlu0 %530
    %v533 = vadd.f32 %v523, %v531
    %v534 = vtanh.pop %v533
    %536 = vrot.lane.b32.xlu0 %v534, 64
    %v537 = vpop.permute.xlu0 %536
    %v539 = vmul.f32 %v521, %v537
    %541 = vrot.lane.b32.xlu0 %v480, 32
    %v542 = vpop.permute.xlu0 %541
    %v543 = vsel %vm178, %v542, 0
    %545 = vmatpush.msra.mxu0 0.0
    %546 = vmatpush.msra.mxu0 0.0
    %547 = vmatpush.msra.mxu0 0.0
    %548 = vmatpush.msra.mxu0 0.0
    %549 = vmatpush.msra.mxu0 0.0
    %550 = vmatpush.msra.mxu0 0.0
    %551 = vmatpush.msra.mxu0 0.0
    %552 = vmatpush.msra.mxu0 0.0
    %553 = vmatpush.msra.mxu0 0.0
    %554 = vmatpush.msra.mxu0 0.0
    %555 = vmatpush.msra.mxu0 0.0
    %556 = vmatpush.msra.mxu0 0.0
    %557 = vmatpush.msra.mxu0 %v168
    %558 = vmatpush.msra.mxu0 %v167
    %559 = vmatpush.msra.mxu0 %v166
    %560 = vmatpush.msra.mxu0 %v165
    %561 = vmatmul.f32.gmra.mxu0 %v543
    %v562 = vpop.f32.mrf.mxu0
    %v563 = vadd.f32 0.0, %v562
    %564 = vdwg.mxu0
    %566 = vrot.lane.b32.xlu0 %v539, 32
    %v567 = vpop.permute.xlu0 %566
    %v568 = vsel %vm178, %v567, 0
    %570 = vmatpush.msra.mxu0 0.0
    %571 = vmatpush.msra.mxu0 0.0
    %572 = vmatpush.msra.mxu0 0.0
    %573 = vmatpush.msra.mxu0 0.0
    %574 = vmatpush.msra.mxu0 0.0
    %575 = vmatpush.msra.mxu0 0.0
    %576 = vmatpush.msra.mxu0 0.0
    %577 = vmatpush.msra.mxu0 0.0
    %578 = vmatpush.msra.mxu0 0.0
    %579 = vmatpush.msra.mxu0 0.0
    %580 = vmatpush.msra.mxu0 0.0
    %581 = vmatpush.msra.mxu0 0.0
    %582 = vmatpush.msra.mxu0 %v164
    %583 = vmatpush.msra.mxu0 %v163
    %584 = vmatpush.msra.mxu0 %v162
    %585 = vmatpush.msra.mxu0 %v161
    %586 = vmatmul.f32.gmra.mxu0 %v568
    %v587 = vpop.f32.mrf.mxu0
    %v588 = vadd.f32 %v563, %v587
    %589 = vdwg.mxu0
    %v590 = vadd.f32 %v588, %v171
    %v591 = vxor.u32 %v590, 2147483648
    %v592 = vmul.f32 %v591, 1.442695
    %v593 = vpow.pop %v592
    %v594 = vadd.f32 %v593, 1.0
    %v595 = vrcp.pop %v594
    %v596 = vmul.f32 %v594, %v595
    %v597 = vsub.f32 1.0, %v596
    %v598 = vmul.f32 %v595, %v597
    %v599 = vadd.f32 %v595, %v598
    %vm600 = vweird.f32 %v594
    %vm601 = vweird.f32 %v595
    %vm602 = vmor %vm600, %vm601
    %v603 = vsel %vm602, %v595, %v599
    %v604 = vand.u32 2147483647, %v594
    %vm605 = vcmp.eq.f32.partialorder %v604, 8.507059e+37
    %v606 = vand.u32 %v594, 2147483648
    %v607 = vor.u32 1.1754944e-38, %v606
    %v608 = vsel %vm605, %v607, %v603
    %v609 = vmul.f32 1.0, %v608
    %v610 = vtanh.pop %v590
    %v611 = vmul.f32 %v609, %v474
    %613 = vrot.lane.b32.xlu0 %v610, 64
    %v614 = vpop.permute.xlu0 %613
    %v616 = vmul.f32 %v609, %v614
    %618 = vrot.lane.b32.xlu0 %v616, 32
    %v619 = vpop.permute.xlu0 %618
    %v621 = vadd.f32 %v611, %v619
    %v622 = vtanh.pop %v621
    %624 = vrot.lane.b32.xlu0 %v622, 64
    %v625 = vpop.permute.xlu0 %624
    %v627 = vmul.f32 %v609, %v625
    %v628 = vld [vmem:[#allocation2 + $0x18] sm:$0xff]
    %629 = vmatpush.msra.mxu0 0.0
    %630 = vmatpush.msra.mxu0 0.0
    %631 = vmatpush.msra.mxu0 0.0
    %632 = vmatpush.msra.mxu0 0.0
    %633 = vmatpush.msra.mxu0 0.0
    %634 = vmatpush.msra.mxu0 0.0
    %635 = vmatpush.msra.mxu0 0.0
    %636 = vmatpush.msra.mxu0 0.0
    %637 = vmatpush.msra.mxu0 0.0
    %638 = vmatpush.msra.mxu0 0.0
    %639 = vmatpush.msra.mxu0 0.0
    %640 = vmatpush.msra.mxu0 0.0
    %641 = vmatpush.msra.mxu0 %v160
    %642 = vmatpush.msra.mxu0 %v159
    %643 = vmatpush.msra.mxu0 %v158
    %644 = vmatpush.msra.mxu0 %v157
    %645 = vmatmul.f32.gmra.mxu0 %v568
    %v646 = vpop.f32.mrf.mxu0
    %v647 = vadd.f32 0.0, %v646
    %648 = vdwg.mxu0
    %v649 = vadd.f32 %v628, %v647
    %v650 = vxor.u32 %v649, 2147483648
    %v651 = vmul.f32 %v650, 1.442695
    %v652 = vpow.pop %v651
    %v653 = vadd.f32 %v652, 1.0
    %v654 = vrcp.pop %v653
    %v655 = vmul.f32 %v653, %v654
    %v656 = vsub.f32 1.0, %v655
    %v657 = vmul.f32 %v654, %v656
    %v658 = vadd.f32 %v654, %v657
    %vm659 = vweird.f32 %v653
    %vm660 = vweird.f32 %v654
    %vm661 = vmor %vm659, %vm660
    %v662 = vsel %vm661, %v654, %v658
    %v663 = vand.u32 2147483647, %v653
    %vm664 = vcmp.eq.f32.partialorder %v663, 8.507059e+37
    %v665 = vand.u32 %v653, 2147483648
    %v666 = vor.u32 1.1754944e-38, %v665
    %v667 = vsel %vm664, %v666, %v662
    %v668 = vmul.f32 1.0, %v667
    %v669 = vtanh.pop %v649
    %v670 = vmul.f32 %v668, %v533
    %672 = vrot.lane.b32.xlu0 %v669, 64
    %v673 = vpop.permute.xlu0 %672
    %v675 = vmul.f32 %v668, %v673
    %677 = vrot.lane.b32.xlu0 %v675, 32
    %v678 = vpop.permute.xlu0 %677
    %v680 = vadd.f32 %v670, %v678
    %v681 = vtanh.pop %v680
    %683 = vrot.lane.b32.xlu0 %v681, 64
    %v684 = vpop.permute.xlu0 %683
    %v686 = vmul.f32 %v668, %v684
    %688 = vrot.lane.b32.xlu0 %v627, 32
    %v689 = vpop.permute.xlu0 %688
    %v690 = vsel %vm178, %v689, 0
    %692 = vmatpush.msra.mxu0 0.0
    %693 = vmatpush.msra.mxu0 0.0
    %694 = vmatpush.msra.mxu0 0.0
    %695 = vmatpush.msra.mxu0 0.0
    %696 = vmatpush.msra.mxu0 0.0
    %697 = vmatpush.msra.mxu0 0.0
    %698 = vmatpush.msra.mxu0 0.0
    %699 = vmatpush.msra.mxu0 0.0
    %700 = vmatpush.msra.mxu0 0.0
    %701 = vmatpush.msra.mxu0 0.0
    %702 = vmatpush.msra.mxu0 0.0
    %703 = vmatpush.msra.mxu0 0.0
    %704 = vmatpush.msra.mxu0 %v168
    %705 = vmatpush.msra.mxu0 %v167
    %706 = vmatpush.msra.mxu0 %v166
    %707 = vmatpush.msra.mxu0 %v165
    %708 = vmatmul.f32.gmra.mxu0 %v690
    %v709 = vpop.f32.mrf.mxu0
    %v710 = vadd.f32 0.0, %v709
    %711 = vdwg.mxu0
    %713 = vrot.lane.b32.xlu0 %v686, 32
    %v714 = vpop.permute.xlu0 %713
    %v715 = vsel %vm178, %v714, 0
    %717 = vmatpush.msra.mxu0 0.0
    %718 = vmatpush.msra.mxu0 0.0
    %719 = vmatpush.msra.mxu0 0.0
    %720 = vmatpush.msra.mxu0 0.0
    %721 = vmatpush.msra.mxu0 0.0
    %722 = vmatpush.msra.mxu0 0.0
    %723 = vmatpush.msra.mxu0 0.0
    %724 = vmatpush.msra.mxu0 0.0
    %725 = vmatpush.msra.mxu0 0.0
    %726 = vmatpush.msra.mxu0 0.0
    %727 = vmatpush.msra.mxu0 0.0
    %728 = vmatpush.msra.mxu0 0.0
    %729 = vmatpush.msra.mxu0 %v164
    %730 = vmatpush.msra.mxu0 %v163
    %731 = vmatpush.msra.mxu0 %v162
    %732 = vmatpush.msra.mxu0 %v161
    %733 = vmatmul.f32.gmra.mxu0 %v715
    %v734 = vpop.f32.mrf.mxu0
    %v735 = vadd.f32 %v710, %v734
    %736 = vdwg.mxu0
    %v737 = vadd.f32 %v735, %v171
    %v738 = vxor.u32 %v737, 2147483648
    %v739 = vmul.f32 %v738, 1.442695
    %v740 = vpow.pop %v739
    %v741 = vadd.f32 %v740, 1.0
    %v742 = vrcp.pop %v741
    %v743 = vmul.f32 %v741, %v742
    %v744 = vsub.f32 1.0, %v743
    %v745 = vmul.f32 %v742, %v744
    %v746 = vadd.f32 %v742, %v745
    %vm747 = vweird.f32 %v741
    %vm748 = vweird.f32 %v742
    %vm749 = vmor %vm747, %vm748
    %v750 = vsel %vm749, %v742, %v746
    %v751 = vand.u32 2147483647, %v741
    %vm752 = vcmp.eq.f32.partialorder %v751, 8.507059e+37
    %v753 = vand.u32 %v741, 2147483648
    %v754 = vor.u32 1.1754944e-38, %v753
    %v755 = vsel %vm752, %v754, %v750
    %v756 = vmul.f32 1.0, %v755
    %v757 = vtanh.pop %v737
    %v758 = vmul.f32 %v756, %v621
    %760 = vrot.lane.b32.xlu0 %v757, 64
    %v761 = vpop.permute.xlu0 %760
    %v763 = vmul.f32 %v756, %v761
    %765 = vrot.lane.b32.xlu0 %v763, 32
    %v766 = vpop.permute.xlu0 %765
    %v768 = vadd.f32 %v758, %v766
    %v769 = vtanh.pop %v768
    %771 = vrot.lane.b32.xlu0 %v769, 64
    %v772 = vpop.permute.xlu0 %771
    %v774 = vmul.f32 %v756, %v772
    %v775 = vld [vmem:[#allocation2 + $0x20] sm:$0xff]
    %776 = vmatpush.msra.mxu0 0.0
    %777 = vmatpush.msra.mxu0 0.0
    %778 = vmatpush.msra.mxu0 0.0
    %779 = vmatpush.msra.mxu0 0.0
    %780 = vmatpush.msra.mxu0 0.0
    %781 = vmatpush.msra.mxu0 0.0
    %782 = vmatpush.msra.mxu0 0.0
    %783 = vmatpush.msra.mxu0 0.0
    %784 = vmatpush.msra.mxu0 0.0
    %785 = vmatpush.msra.mxu0 0.0
    %786 = vmatpush.msra.mxu0 0.0
    %787 = vmatpush.msra.mxu0 0.0
    %788 = vmatpush.msra.mxu0 %v160
    %789 = vmatpush.msra.mxu0 %v159
    %790 = vmatpush.msra.mxu0 %v158
    %791 = vmatpush.msra.mxu0 %v157
    %792 = vmatmul.f32.gmra.mxu0 %v715
    %v793 = vpop.f32.mrf.mxu0
    %v794 = vadd.f32 0.0, %v793
    %795 = vdwg.mxu0
    %v796 = vadd.f32 %v775, %v794
    %v797 = vxor.u32 %v796, 2147483648
    %v798 = vmul.f32 %v797, 1.442695
    %v799 = vpow.pop %v798
    %v800 = vadd.f32 %v799, 1.0
    %v801 = vrcp.pop %v800
    %v802 = vmul.f32 %v800, %v801
    %v803 = vsub.f32 1.0, %v802
    %v804 = vmul.f32 %v801, %v803
    %v805 = vadd.f32 %v801, %v804
    %vm806 = vweird.f32 %v800
    %vm807 = vweird.f32 %v801
    %vm808 = vmor %vm806, %vm807
    %v809 = vsel %vm808, %v801, %v805
    %v810 = vand.u32 2147483647, %v800
    %vm811 = vcmp.eq.f32.partialorder %v810, 8.507059e+37
    %v812 = vand.u32 %v800, 2147483648
    %v813 = vor.u32 1.1754944e-38, %v812
    %v814 = vsel %vm811, %v813, %v809
    %v815 = vmul.f32 1.0, %v814
    %v816 = vtanh.pop %v796
    %v817 = vmul.f32 %v815, %v680
    %819 = vrot.lane.b32.xlu0 %v816, 64
    %v820 = vpop.permute.xlu0 %819
    %v822 = vmul.f32 %v815, %v820
    %824 = vrot.lane.b32.xlu0 %v822, 32
    %v825 = vpop.permute.xlu0 %824
    %v827 = vadd.f32 %v817, %v825
    %v828 = vtanh.pop %v827
    %830 = vrot.lane.b32.xlu0 %v828, 64
    %v831 = vpop.permute.xlu0 %830
    %v833 = vmul.f32 %v815, %v831
    %835 = vrot.lane.b32.xlu0 %v774, 32
    %v836 = vpop.permute.xlu0 %835
    %v837 = vsel %vm178, %v836, 0
    %839 = vmatpush.msra.mxu0 0.0
    %840 = vmatpush.msra.mxu0 0.0
    %841 = vmatpush.msra.mxu0 0.0
    %842 = vmatpush.msra.mxu0 0.0
    %843 = vmatpush.msra.mxu0 0.0
    %844 = vmatpush.msra.mxu0 0.0
    %845 = vmatpush.msra.mxu0 0.0
    %846 = vmatpush.msra.mxu0 0.0
    %847 = vmatpush.msra.mxu0 0.0
    %848 = vmatpush.msra.mxu0 0.0
    %849 = vmatpush.msra.mxu0 0.0
    %850 = vmatpush.msra.mxu0 0.0
    %851 = vmatpush.msra.mxu0 %v168
    %852 = vmatpush.msra.mxu0 %v167
    %853 = vmatpush.msra.mxu0 %v166
    %854 = vmatpush.msra.mxu0 %v165
    %855 = vmatmul.f32.gmra.mxu0 %v837
    %v856 = vpop.f32.mrf.mxu0
    %v857 = vadd.f32 0.0, %v856
    %858 = vdwg.mxu0
    %860 = vrot.lane.b32.xlu0 %v833, 32
    %v861 = vpop.permute.xlu0 %860
    %v862 = vsel %vm178, %v861, 0
    %864 = vmatpush.msra.mxu0 0.0
    %865 = vmatpush.msra.mxu0 0.0
    %866 = vmatpush.msra.mxu0 0.0
    %867 = vmatpush.msra.mxu0 0.0
    %868 = vmatpush.msra.mxu0 0.0
    %869 = vmatpush.msra.mxu0 0.0
    %870 = vmatpush.msra.mxu0 0.0
    %871 = vmatpush.msra.mxu0 0.0
    %872 = vmatpush.msra.mxu0 0.0
    %873 = vmatpush.msra.mxu0 0.0
    %874 = vmatpush.msra.mxu0 0.0
    %875 = vmatpush.msra.mxu0 0.0
    %876 = vmatpush.msra.mxu0 %v164
    %877 = vmatpush.msra.mxu0 %v163
    %878 = vmatpush.msra.mxu0 %v162
    %879 = vmatpush.msra.mxu0 %v161
    %880 = vmatmul.f32.gmra.mxu0 %v862
    %v881 = vpop.f32.mrf.mxu0
    %v882 = vadd.f32 %v857, %v881
    %883 = vdwg.mxu0
    %v884 = vadd.f32 %v882, %v171
    %v885 = vxor.u32 %v884, 2147483648
    %v886 = vmul.f32 %v885, 1.442695
    %v887 = vpow.pop %v886
    %v888 = vadd.f32 %v887, 1.0
    %v889 = vrcp.pop %v888
    %v890 = vmul.f32 %v888, %v889
    %v891 = vsub.f32 1.0, %v890
    %v892 = vmul.f32 %v889, %v891
    %v893 = vadd.f32 %v889, %v892
    %vm894 = vweird.f32 %v888
    %vm895 = vweird.f32 %v889
    %vm896 = vmor %vm894, %vm895
    %v897 = vsel %vm896, %v889, %v893
    %v898 = vand.u32 2147483647, %v888
    %vm899 = vcmp.eq.f32.partialorder %v898, 8.507059e+37
    %v900 = vand.u32 %v888, 2147483648
    %v901 = vor.u32 1.1754944e-38, %v900
    %v902 = vsel %vm899, %v901, %v897
    %v903 = vmul.f32 1.0, %v902
    %v904 = vtanh.pop %v884
    %v905 = vmul.f32 %v903, %v768
    %907 = vrot.lane.b32.xlu0 %v904, 64
    %v908 = vpop.permute.xlu0 %907
    %v910 = vmul.f32 %v903, %v908
    %912 = vrot.lane.b32.xlu0 %v910, 32
    %v913 = vpop.permute.xlu0 %912
    %v915 = vadd.f32 %v905, %v913
    %v916 = vtanh.pop %v915
    %918 = vrot.lane.b32.xlu0 %v916, 64
    %v919 = vpop.permute.xlu0 %918
    %v921 = vmul.f32 %v903, %v919
    %v922 = vld [vmem:[#allocation2 + $0x28] sm:$0xff]
    %923 = vmatpush.msra.mxu0 0.0
    %924 = vmatpush.msra.mxu0 0.0
    %925 = vmatpush.msra.mxu0 0.0
    %926 = vmatpush.msra.mxu0 0.0
    %927 = vmatpush.msra.mxu0 0.0
    %928 = vmatpush.msra.mxu0 0.0
    %929 = vmatpush.msra.mxu0 0.0
    %930 = vmatpush.msra.mxu0 0.0
    %931 = vmatpush.msra.mxu0 0.0
    %932 = vmatpush.msra.mxu0 0.0
    %933 = vmatpush.msra.mxu0 0.0
    %934 = vmatpush.msra.mxu0 0.0
    %935 = vmatpush.msra.mxu0 %v160
    %936 = vmatpush.msra.mxu0 %v159
    %937 = vmatpush.msra.mxu0 %v158
    %938 = vmatpush.msra.mxu0 %v157
    %939 = vmatmul.f32.gmra.mxu0 %v862
    %v940 = vpop.f32.mrf.mxu0
    %v941 = vadd.f32 0.0, %v940
    %942 = vdwg.mxu0
    %v943 = vadd.f32 %v922, %v941
    %v944 = vxor.u32 %v943, 2147483648
    %v945 = vmul.f32 %v944, 1.442695
    %v946 = vpow.pop %v945
    %v947 = vadd.f32 %v946, 1.0
    %v948 = vrcp.pop %v947
    %v949 = vmul.f32 %v947, %v948
    %v950 = vsub.f32 1.0, %v949
    %v951 = vmul.f32 %v948, %v950
    %v952 = vadd.f32 %v948, %v951
    %vm953 = vweird.f32 %v947
    %vm954 = vweird.f32 %v948
    %vm955 = vmor %vm953, %vm954
    %v956 = vsel %vm955, %v948, %v952
    %v957 = vand.u32 2147483647, %v947
    %vm958 = vcmp.eq.f32.partialorder %v957, 8.507059e+37
    %v959 = vand.u32 %v947, 2147483648
    %v960 = vor.u32 1.1754944e-38, %v959
    %v961 = vsel %vm958, %v960, %v956
    %v962 = vmul.f32 1.0, %v961
    %v963 = vtanh.pop %v943
    %v964 = vmul.f32 %v962, %v827
    %966 = vrot.lane.b32.xlu0 %v963, 64
    %v967 = vpop.permute.xlu0 %966
    %v969 = vmul.f32 %v962, %v967
    %971 = vrot.lane.b32.xlu0 %v969, 32
    %v972 = vpop.permute.xlu0 %971
    %v974 = vadd.f32 %v964, %v972
    %v975 = vtanh.pop %v974
    %977 = vrot.lane.b32.xlu0 %v975, 64
    %v978 = vpop.permute.xlu0 %977
    %v980 = vmul.f32 %v962, %v978
    %982 = vrot.lane.b32.xlu0 %v921, 32
    %v983 = vpop.permute.xlu0 %982
    %v984 = vsel %vm178, %v983, 0
    %986 = vmatpush.msra.mxu0 0.0
    %987 = vmatpush.msra.mxu0 0.0
    %988 = vmatpush.msra.mxu0 0.0
    %989 = vmatpush.msra.mxu0 0.0
    %990 = vmatpush.msra.mxu0 0.0
    %991 = vmatpush.msra.mxu0 0.0
    %992 = vmatpush.msra.mxu0 0.0
    %993 = vmatpush.msra.mxu0 0.0
    %994 = vmatpush.msra.mxu0 0.0
    %995 = vmatpush.msra.mxu0 0.0
    %996 = vmatpush.msra.mxu0 0.0
    %997 = vmatpush.msra.mxu0 0.0
    %998 = vmatpush.msra.mxu0 %v168
    %999 = vmatpush.msra.mxu0 %v167
    %1000 = vmatpush.msra.mxu0 %v166
    %1001 = vmatpush.msra.mxu0 %v165
    %1002 = vmatmul.f32.gmra.mxu0 %v984
    %v1003 = vpop.f32.mrf.mxu0
    %v1004 = vadd.f32 0.0, %v1003
    %1005 = vdwg.mxu0
    %1007 = vrot.lane.b32.xlu0 %v980, 32
    %v1008 = vpop.permute.xlu0 %1007
    %v1009 = vsel %vm178, %v1008, 0
    %1011 = vmatpush.msra.mxu0 0.0
    %1012 = vmatpush.msra.mxu0 0.0
    %1013 = vmatpush.msra.mxu0 0.0
    %1014 = vmatpush.msra.mxu0 0.0
    %1015 = vmatpush.msra.mxu0 0.0
    %1016 = vmatpush.msra.mxu0 0.0
    %1017 = vmatpush.msra.mxu0 0.0
    %1018 = vmatpush.msra.mxu0 0.0
    %1019 = vmatpush.msra.mxu0 0.0
    %1020 = vmatpush.msra.mxu0 0.0
    %1021 = vmatpush.msra.mxu0 0.0
    %1022 = vmatpush.msra.mxu0 0.0
    %1023 = vmatpush.msra.mxu0 %v164
    %1024 = vmatpush.msra.mxu0 %v163
    %1025 = vmatpush.msra.mxu0 %v162
    %1026 = vmatpush.msra.mxu0 %v161
    %1027 = vmatmul.f32.gmra.mxu0 %v1009
    %v1028 = vpop.f32.mrf.mxu0
    %v1029 = vadd.f32 %v1004, %v1028
    %1030 = vdwg.mxu0
    %v1031 = vadd.f32 %v1029, %v171
    %v1032 = vxor.u32 %v1031, 2147483648
    %v1033 = vmul.f32 %v1032, 1.442695
    %v1034 = vpow.pop %v1033
    %v1035 = vadd.f32 %v1034, 1.0
    %v1036 = vrcp.pop %v1035
    %v1037 = vmul.f32 %v1035, %v1036
    %v1038 = vsub.f32 1.0, %v1037
    %v1039 = vmul.f32 %v1036, %v1038
    %v1040 = vadd.f32 %v1036, %v1039
    %vm1041 = vweird.f32 %v1035
    %vm1042 = vweird.f32 %v1036
    %vm1043 = vmor %vm1041, %vm1042
    %v1044 = vsel %vm1043, %v1036, %v1040
    %v1045 = vand.u32 2147483647, %v1035
    %vm1046 = vcmp.eq.f32.partialorder %v1045, 8.507059e+37
    %v1047 = vand.u32 %v1035, 2147483648
    %v1048 = vor.u32 1.1754944e-38, %v1047
    %v1049 = vsel %vm1046, %v1048, %v1044
    %v1050 = vmul.f32 1.0, %v1049
    %v1051 = vtanh.pop %v1031
    %v1052 = vmul.f32 %v1050, %v915
    %1054 = vrot.lane.b32.xlu0 %v1051, 64
    %v1055 = vpop.permute.xlu0 %1054
    %v1057 = vmul.f32 %v1050, %v1055
    %1059 = vrot.lane.b32.xlu0 %v1057, 32
    %v1060 = vpop.permute.xlu0 %1059
    %v1062 = vadd.f32 %v1052, %v1060
    %v1063 = vtanh.pop %v1062
    %1065 = vrot.lane.b32.xlu0 %v1063, 64
    %v1066 = vpop.permute.xlu0 %1065
    %v1068 = vmul.f32 %v1050, %v1066
    %v1069 = vld [vmem:[#allocation2 + $0x30] sm:$0xff]
    %1070 = vmatpush.msra.mxu0 0.0
    %1071 = vmatpush.msra.mxu0 0.0
    %1072 = vmatpush.msra.mxu0 0.0
    %1073 = vmatpush.msra.mxu0 0.0
    %1074 = vmatpush.msra.mxu0 0.0
    %1075 = vmatpush.msra.mxu0 0.0
    %1076 = vmatpush.msra.mxu0 0.0
    %1077 = vmatpush.msra.mxu0 0.0
    %1078 = vmatpush.msra.mxu0 0.0
    %1079 = vmatpush.msra.mxu0 0.0
    %1080 = vmatpush.msra.mxu0 0.0
    %1081 = vmatpush.msra.mxu0 0.0
    %1082 = vmatpush.msra.mxu0 %v160
    %1083 = vmatpush.msra.mxu0 %v159
    %1084 = vmatpush.msra.mxu0 %v158
    %1085 = vmatpush.msra.mxu0 %v157
    %1086 = vmatmul.f32.gmra.mxu0 %v1009
    %v1087 = vpop.f32.mrf.mxu0
    %v1088 = vadd.f32 0.0, %v1087
    %1089 = vdwg.mxu0
    %v1090 = vadd.f32 %v1069, %v1088
    %v1091 = vxor.u32 %v1090, 2147483648
    %v1092 = vmul.f32 %v1091, 1.442695
    %v1093 = vpow.pop %v1092
    %v1094 = vadd.f32 %v1093, 1.0
    %v1095 = vrcp.pop %v1094
    %v1096 = vmul.f32 %v1094, %v1095
    %v1097 = vsub.f32 1.0, %v1096
    %v1098 = vmul.f32 %v1095, %v1097
    %v1099 = vadd.f32 %v1095, %v1098
    %vm1100 = vweird.f32 %v1094
    %vm1101 = vweird.f32 %v1095
    %vm1102 = vmor %vm1100, %vm1101
    %v1103 = vsel %vm1102, %v1095, %v1099
    %v1104 = vand.u32 2147483647, %v1094
    %vm1105 = vcmp.eq.f32.partialorder %v1104, 8.507059e+37
    %v1106 = vand.u32 %v1094, 2147483648
    %v1107 = vor.u32 1.1754944e-38, %v1106
    %v1108 = vsel %vm1105, %v1107, %v1103
    %v1109 = vmul.f32 1.0, %v1108
    %v1110 = vtanh.pop %v1090
    %v1111 = vmul.f32 %v1109, %v974
    %1113 = vrot.lane.b32.xlu0 %v1110, 64
    %v1114 = vpop.permute.xlu0 %1113
    %v1116 = vmul.f32 %v1109, %v1114
    %1118 = vrot.lane.b32.xlu0 %v1116, 32
    %v1119 = vpop.permute.xlu0 %1118
    %v1121 = vadd.f32 %v1111, %v1119
    %v1122 = vtanh.pop %v1121
    %1124 = vrot.lane.b32.xlu0 %v1122, 64
    %v1125 = vpop.permute.xlu0 %1124
    %v1127 = vmul.f32 %v1109, %v1125
    %1129 = vrot.lane.b32.xlu0 %v1068, 32
    %v1130 = vpop.permute.xlu0 %1129
    %v1131 = vsel %vm178, %v1130, 0
    %1133 = vmatpush.msra.mxu0 0.0
    %1134 = vmatpush.msra.mxu0 0.0
    %1135 = vmatpush.msra.mxu0 0.0
    %1136 = vmatpush.msra.mxu0 0.0
    %1137 = vmatpush.msra.mxu0 0.0
    %1138 = vmatpush.msra.mxu0 0.0
    %1139 = vmatpush.msra.mxu0 0.0
    %1140 = vmatpush.msra.mxu0 0.0
    %1141 = vmatpush.msra.mxu0 0.0
    %1142 = vmatpush.msra.mxu0 0.0
    %1143 = vmatpush.msra.mxu0 0.0
    %1144 = vmatpush.msra.mxu0 0.0
    %1145 = vmatpush.msra.mxu0 %v168
    %1146 = vmatpush.msra.mxu0 %v167
    %1147 = vmatpush.msra.mxu0 %v166
    %1148 = vmatpush.msra.mxu0 %v165
    %1149 = vmatmul.f32.gmra.mxu0 %v1131
    %v1150 = vpop.f32.mrf.mxu0
    %v1151 = vadd.f32 0.0, %v1150
    %1152 = vdwg.mxu0
    %1154 = vrot.lane.b32.xlu0 %v1127, 32
    %v1155 = vpop.permute.xlu0 %1154
    %v1156 = vsel %vm178, %v1155, 0
    %1158 = vmatpush.msra.mxu0 0.0
    %1159 = vmatpush.msra.mxu0 0.0
    %1160 = vmatpush.msra.mxu0 0.0
    %1161 = vmatpush.msra.mxu0 0.0
    %1162 = vmatpush.msra.mxu0 0.0
    %1163 = vmatpush.msra.mxu0 0.0
    %1164 = vmatpush.msra.mxu0 0.0
    %1165 = vmatpush.msra.mxu0 0.0
    %1166 = vmatpush.msra.mxu0 0.0
    %1167 = vmatpush.msra.mxu0 0.0
    %1168 = vmatpush.msra.mxu0 0.0
    %1169 = vmatpush.msra.mxu0 0.0
    %1170 = vmatpush.msra.mxu0 %v164
    %1171 = vmatpush.msra.mxu0 %v163
    %1172 = vmatpush.msra.mxu0 %v162
    %1173 = vmatpush.msra.mxu0 %v161
    %1174 = vmatmul.f32.gmra.mxu0 %v1156
    %v1175 = vpop.f32.mrf.mxu0
    %v1176 = vadd.f32 %v1151, %v1175
    %1177 = vdwg.mxu0
    %v1178 = vadd.f32 %v1176, %v171
    %v1179 = vxor.u32 %v1178, 2147483648
    %v1180 = vmul.f32 %v1179, 1.442695
    %v1181 = vpow.pop %v1180
    %v1182 = vadd.f32 %v1181, 1.0
    %v1183 = vrcp.pop %v1182
    %v1184 = vmul.f32 %v1182, %v1183
    %v1185 = vsub.f32 1.0, %v1184
    %v1186 = vmul.f32 %v1183, %v1185
    %v1187 = vadd.f32 %v1183, %v1186
    %vm1188 = vweird.f32 %v1182
    %vm1189 = vweird.f32 %v1183
    %vm1190 = vmor %vm1188, %vm1189
    %v1191 = vsel %vm1190, %v1183, %v1187
    %v1192 = vand.u32 2147483647, %v1182
    %vm1193 = vcmp.eq.f32.partialorder %v1192, 8.507059e+37
    %v1194 = vand.u32 %v1182, 2147483648
    %v1195 = vor.u32 1.1754944e-38, %v1194
    %v1196 = vsel %vm1193, %v1195, %v1191
    %v1197 = vmul.f32 1.0, %v1196
    %v1198 = vtanh.pop %v1178
    %v1199 = vmul.f32 %v1197, %v1062
    %1201 = vrot.lane.b32.xlu0 %v1198, 64
    %v1202 = vpop.permute.xlu0 %1201
    %v1204 = vmul.f32 %v1197, %v1202
    %1206 = vrot.lane.b32.xlu0 %v1204, 32
    %v1207 = vpop.permute.xlu0 %1206
    %v1209 = vadd.f32 %v1199, %v1207
    %v1210 = vtanh.pop %v1209
    %1212 = vrot.lane.b32.xlu0 %v1210, 64
    %v1213 = vpop.permute.xlu0 %1212
    %v1215 = vmul.f32 %v1197, %v1213
    %v1216 = vld [vmem:[#allocation2 + $0x38] sm:$0xff]
    %1217 = vmatpush.msra.mxu0 0.0
    %1218 = vmatpush.msra.mxu0 0.0
    %1219 = vmatpush.msra.mxu0 0.0
    %1220 = vmatpush.msra.mxu0 0.0
    %1221 = vmatpush.msra.mxu0 0.0
    %1222 = vmatpush.msra.mxu0 0.0
    %1223 = vmatpush.msra.mxu0 0.0
    %1224 = vmatpush.msra.mxu0 0.0
    %1225 = vmatpush.msra.mxu0 0.0
    %1226 = vmatpush.msra.mxu0 0.0
    %1227 = vmatpush.msra.mxu0 0.0
    %1228 = vmatpush.msra.mxu0 0.0
    %1229 = vmatpush.msra.mxu0 %v160
    %1230 = vmatpush.msra.mxu0 %v159
    %1231 = vmatpush.msra.mxu0 %v158
    %1232 = vmatpush.msra.mxu0 %v157
    %1233 = vmatmul.f32.gmra.mxu0 %v1156
    %v1234 = vpop.f32.mrf.mxu0
    %v1235 = vadd.f32 0.0, %v1234
    %1236 = vdwg.mxu0
    %v1237 = vadd.f32 %v1216, %v1235
    %v1238 = vxor.u32 %v1237, 2147483648
    %v1239 = vmul.f32 %v1238, 1.442695
    %v1240 = vpow.pop %v1239
    %v1241 = vadd.f32 %v1240, 1.0
    %v1242 = vrcp.pop %v1241
    %v1243 = vmul.f32 %v1241, %v1242
    %v1244 = vsub.f32 1.0, %v1243
    %v1245 = vmul.f32 %v1242, %v1244
    %v1246 = vadd.f32 %v1242, %v1245
    %vm1247 = vweird.f32 %v1241
    %vm1248 = vweird.f32 %v1242
    %vm1249 = vmor %vm1247, %vm1248
    %v1250 = vsel %vm1249, %v1242, %v1246
    %v1251 = vand.u32 2147483647, %v1241
    %vm1252 = vcmp.eq.f32.partialorder %v1251, 8.507059e+37
    %v1253 = vand.u32 %v1241, 2147483648
    %v1254 = vor.u32 1.1754944e-38, %v1253
    %v1255 = vsel %vm1252, %v1254, %v1250
    %v1256 = vmul.f32 1.0, %v1255
    %v1257 = vtanh.pop %v1237
    %v1258 = vmul.f32 %v1256, %v1121
    %1260 = vrot.lane.b32.xlu0 %v1257, 64
    %v1261 = vpop.permute.xlu0 %1260
    %v1263 = vmul.f32 %v1256, %v1261
    %1265 = vrot.lane.b32.xlu0 %v1263, 32
    %v1266 = vpop.permute.xlu0 %1265
    %v1268 = vadd.f32 %v1258, %v1266
    %v1269 = vtanh.pop %v1268
    %1271 = vrot.lane.b32.xlu0 %v1269, 64
    %v1272 = vpop.permute.xlu0 %1271
    %v1274 = vmul.f32 %v1256, %v1272
    %1276 = vrot.lane.b32.xlu0 %v1215, 32
    %v1277 = vpop.permute.xlu0 %1276
    %v1278 = vsel %vm178, %v1277, 0
    %1280 = vmatpush.msra.mxu0 0.0
    %1281 = vmatpush.msra.mxu0 0.0
    %1282 = vmatpush.msra.mxu0 0.0
    %1283 = vmatpush.msra.mxu0 0.0
    %1284 = vmatpush.msra.mxu0 0.0
    %1285 = vmatpush.msra.mxu0 0.0
    %1286 = vmatpush.msra.mxu0 0.0
    %1287 = vmatpush.msra.mxu0 0.0
    %1288 = vmatpush.msra.mxu0 0.0
    %1289 = vmatpush.msra.mxu0 0.0
    %1290 = vmatpush.msra.mxu0 0.0
    %1291 = vmatpush.msra.mxu0 0.0
    %1292 = vmatpush.msra.mxu0 %v168
    %1293 = vmatpush.msra.mxu0 %v167
    %1294 = vmatpush.msra.mxu0 %v166
    %1295 = vmatpush.msra.mxu0 %v165
    %1296 = vmatmul.f32.gmra.mxu0 %v1278
    %v1297 = vpop.f32.mrf.mxu0
    %v1298 = vadd.f32 0.0, %v1297
    %1299 = vdwg.mxu0
    %1301 = vrot.lane.b32.xlu0 %v1274, 32
    %v1302 = vpop.permute.xlu0 %1301
    %v1303 = vsel %vm178, %v1302, 0
    %1305 = vmatpush.msra.mxu0 0.0
    %1306 = vmatpush.msra.mxu0 0.0
    %1307 = vmatpush.msra.mxu0 0.0
    %1308 = vmatpush.msra.mxu0 0.0
    %1309 = vmatpush.msra.mxu0 0.0
    %1310 = vmatpush.msra.mxu0 0.0
    %1311 = vmatpush.msra.mxu0 0.0
    %1312 = vmatpush.msra.mxu0 0.0
    %1313 = vmatpush.msra.mxu0 0.0
    %1314 = vmatpush.msra.mxu0 0.0
    %1315 = vmatpush.msra.mxu0 0.0
    %1316 = vmatpush.msra.mxu0 0.0
    %1317 = vmatpush.msra.mxu0 %v164
    %1318 = vmatpush.msra.mxu0 %v163
    %1319 = vmatpush.msra.mxu0 %v162
    %1320 = vmatpush.msra.mxu0 %v161
    %1321 = vmatmul.f32.gmra.mxu0 %v1303
    %v1322 = vpop.f32.mrf.mxu0
    %v1323 = vadd.f32 %v1298, %v1322
    %1324 = vdwg.mxu0
    %v1325 = vadd.f32 %v1323, %v171
    %v1326 = vxor.u32 %v1325, 2147483648
    %v1327 = vmul.f32 %v1326, 1.442695
    %v1328 = vpow.pop %v1327
    %v1329 = vadd.f32 %v1328, 1.0
    %v1330 = vrcp.pop %v1329
    %v1331 = vmul.f32 %v1329, %v1330
    %v1332 = vsub.f32 1.0, %v1331
    %v1333 = vmul.f32 %v1330, %v1332
    %v1334 = vadd.f32 %v1330, %v1333
    %vm1335 = vweird.f32 %v1329
    %vm1336 = vweird.f32 %v1330
    %vm1337 = vmor %vm1335, %vm1336
    %v1338 = vsel %vm1337, %v1330, %v1334
    %v1339 = vand.u32 2147483647, %v1329
    %vm1340 = vcmp.eq.f32.partialorder %v1339, 8.507059e+37
    %v1341 = vand.u32 %v1329, 2147483648
    %v1342 = vor.u32 1.1754944e-38, %v1341
    %v1343 = vsel %vm1340, %v1342, %v1338
    %v1344 = vmul.f32 1.0, %v1343
    %v1345 = vtanh.pop %v1325
    %v1346 = vmul.f32 %v1344, %v1209
    %1348 = vrot.lane.b32.xlu0 %v1345, 64
    %v1349 = vpop.permute.xlu0 %1348
    %v1351 = vmul.f32 %v1344, %v1349
    %1353 = vrot.lane.b32.xlu0 %v1351, 32
    %v1354 = vpop.permute.xlu0 %1353
    %v1356 = vadd.f32 %v1346, %v1354
    %v1357 = vtanh.pop %v1356
    %1359 = vrot.lane.b32.xlu0 %v1357, 64
    %v1360 = vpop.permute.xlu0 %1359
    %v1362 = vmul.f32 %v1344, %v1360
    %1364 = vst.msk [vmem:[#allocation3] sm:$0xff] %vm178, %v1302
    %1366 = vrot.lane.b32.xlu0 %v1268, 96
    %v1367 = vpop.permute.xlu0 %1366
    %1369 = vst.msk [vmem:[#allocation4] sm:$0xff] %vm178, %v1367
    %1371 = vrot.lane.b32.xlu0 %v1362, 32
    %v1372 = vpop.permute.xlu0 %1371
    %1374 = vst.msk [vmem:[#allocation5] sm:$0xff] %vm178, %v1372
    %1376 = vrot.lane.b32.xlu0 %v1356, 96
    %v1377 = vpop.permute.xlu0 %1376
    %1379 = vst.msk [vmem:[#allocation6] sm:$0xff] %vm178, %v1377
    // Predicated region
    $region46: #{tpu_custom_call.1} parent=1 // pred_check
      %p1380 = pneg %p60
    $region47: #{tpu_custom_call.1} parent=1 // pred_check_branch
      %1382 = sbr.rel (%p1380) target = $region49
    $region48: #{tpu_custom_call.1} parent=1 // pred_region
      %v1383 = vld [vmem:[%s7] sm:$0x3]
      %vm1384 = vcmask 64512
      %v1386 = vsel %vm1384, %v1383, 0
      %1388 = vmatpush.msra.mxu0 0.0
      %1389 = vmatpush.msra.mxu0 0.0
      %1390 = vmatpush.msra.mxu0 0.0
      %1391 = vmatpush.msra.mxu0 0.0
      %1392 = vmatpush.msra.mxu0 0.0
      %1393 = vmatpush.msra.mxu0 0.0
      %1394 = vmatpush.msra.mxu0 0.0
      %1395 = vmatpush.msra.mxu0 0.0
      %1396 = vmatpush.msra.mxu0 0.0
      %1397 = vmatpush.msra.mxu0 0.0
      %1398 = vmatpush.msra.mxu0 0.0
      %1399 = vmatpush.msra.mxu0 0.0
      %1400 = vmatpush.msra.mxu0 0.0
      %1401 = vmatpush.msra.mxu0 0.0
      %1402 = vmatpush.msra.mxu0 0.0
      %1403 = vmatpush.msra.mxu0 %v1372
      %1404 = vmatmul.f32.gmra.mxu0 %v1386
      %v1405 = vpop.f32.mrf.mxu0
      %v1406 = vadd.f32 0.0, %v1405
      %1407 = vdwg.mxu0
      %vm1408 = vcmask 254976
      %1409 = vst.msk [vmem:[#allocation12] sm:$0x3] %vm1408, %v1406
    $region49: #{tpu_custom_call.1} parent=1 // pred_fallthru
      _
    // Predicated region
    $region50: #{tpu_custom_call.1} parent=1 // pred_check
      _
    $region51: #{tpu_custom_call.1} parent=1 // pred_check_branch
      %1411 = sbr.rel (0) target = $region53
    $region52: #{tpu_custom_call.1} parent=1 // pred_region
      %1413 = vsyncadd [#allocation9], 0
      %s1415 = sshll.u32 [#allocation12], 4
      %s1416 = int_to_ptr.vmem [resolvable:$true] %s1415
      %s1417 = sshll.u32 %s8, 4
      %s1418 = int_to_ptr.hbm [resolvable:$true] %s1417
      %1420 = dma.vmem_to_hbm [thread:$0]  %s1416, 32, %s1418, [#allocation9]
    $region53: #{tpu_custom_call.1} parent=1 // pred_fallthru
      _
    // Predicated region
    $region54: #{tpu_custom_call.1} parent=1 // pred_check
      _
    $region55: #{tpu_custom_call.1} parent=1 // pred_check_branch
      %1422 = sbr.rel (0) target = $region57
    $region56: #{tpu_custom_call.1} parent=1 // pred_region
      %1424 = dma.done [#allocation9], 32
    $region57: #{tpu_custom_call.1} parent=1 // pred_fallthru
      _
    %1425 = vsyncpa [#allocation8], 1
    %1426 = vsyncpa [#allocation11], 1
    %1427 = vsyncpa [#allocation9], 1

</llo_original>
